<compile_context>
chip_gen: v6e
topology: v6e:2x2x1
jax: 0.10.0
libtpu: 0.0.40
codegen_flags: <defaults>
</compile_context>

<pallas_src>
import jax
import jax.numpy as jnp
from jax import lax
from jax.experimental import pallas as pl
from jax.experimental.pallas import tpu as pltpu

EPS = 1e-5                   # nn.InstanceNorm2d default eps
CONV_DTYPE = jnp.bfloat16    # MXU operand dtype (f32 accumulation); jnp.float32 for max fidelity


def _round_up(x, m):
    return ((x + m - 1) // m) * m


def _make_resnet_block_kernel(H, W, C, Cr, Qw, Lg, E, Gw):
    """Build the per-sample kernel.  Cr = channels rounded to a packed sublane tile."""
    Hp, Wp = H + 2, W + 2
    Qs = H * Wp - 2                       # flat conv positions covering every valid (y, x)
    inv_hw = 1.0 / float(H * W)
    offsets = [dy * Wp + dx for dy in range(3) for dx in range(3)]
    use_slab = C < 128                    # slab only for tiny C; 9 accumulated matmuls otherwise

    def conv3x3(src, w9):
        """src: (Cr, Lsrc) CONV_DTYPE flat reflection-padded image (row width Wp).
        w9: (C, 9*Cr) CONV_DTYPE, column index = tap*Cr + cin.  Returns (C, Qw) f32."""
        if use_slab:
            taps = [src[:, o:o + Qw] for o in offsets]
            slab = jnp.stack(taps, axis=0).reshape(9 * Cr, Qw)   # tile-aligned leading merge
            return jnp.dot(w9, slab, preferred_element_type=jnp.float32)
        acc = jnp.zeros((C, Qw), jnp.float32)
        for t, o in enumerate(offsets):                          # 9 MXU accumulations, no slab
            acc = acc + jnp.dot(w9[:, t * Cr:(t + 1) * Cr], src[:, o:o + Qw],
                                preferred_element_type=jnp.float32)
        return acc

    def instance_norm(y, valid, relu):
        """Fused one-pass instance norm (affine-free); junk lanes excluded from statistics."""
        yv = jnp.where(valid, y, 0.0)
        s1 = jnp.sum(yv, axis=1, keepdims=True)
        s2 = jnp.sum(yv * yv, axis=1, keepdims=True)
        mean = s1 * inv_hw
        var = jnp.maximum(s2 * inv_hw - mean * mean, 0.0)
        y = (y - mean) * lax.rsqrt(var + EPS)                    # rsqrt -> EUP
        if relu:
            y = jnp.maximum(y, 0.0)
        return y

    def kernel(xp_ref, w1_ref, w2_ref, o_ref, g_ref):
        xp = xp_ref[0]                                           # (Cr, Lx) f32
        lane_q = lax.broadcasted_iota(jnp.int32, (1, Qw), 1)
        valid = (lane_q % Wp < W) & (lane_q < Qs)                # junk-column / tail mask

        # ---- stage 1: conv3x3 -> instance norm -> relu (input reflection-padded on host)
        y1 = instance_norm(conv3x3(xp.astype(CONV_DTYPE), w1_ref[...]), valid, True)

        # ---- rebuild the stage-2 reflection-padded flat image inside VMEM
        if Cr > C:
            # Pad-channel sublanes must not hold NaN garbage (their weight columns are zero,
            # but 0*NaN would poison the matmul); this is a tiny (Cr-C)-row store and vanishes
            # entirely when C is already a multiple of the sublane pack.
            g_ref[C:Cr, :] = jnp.zeros((Cr - C, Gw), CONV_DTYPE)
        g_ref[0:C, E + Wp + 1:E + Wp + 1 + Qw] = y1.astype(CONV_DTYPE)
        # top/bottom rows: two narrow Wp-wide copies (ReflectionPad2d(1): row0<-row2, last<-Hp-3)
        g_ref[:, E:E + Wp] = g_ref[:, E + 2 * Wp:E + 3 * Wp]
        g_ref[:, E + (Hp - 1) * Wp:E + Hp * Wp] = g_ref[:, E + (Hp - 3) * Wp:E + (Hp - 2) * Wp]
        # left/right columns: masked selects of +-2-lane shifted views, read AFTER the row
        # copies so the four corners pick up the fixed rows (do not reorder).
        gsrc = g_ref[:, E:E + Lg]
        gp2 = g_ref[:, E + 2:E + 2 + Lg]
        gm2 = g_ref[:, E - 2:E - 2 + Lg]
        col = lax.broadcasted_iota(jnp.int32, (1, Lg), 1) % Wp
        gsrc = jnp.where(col == 0, gp2, gsrc)
        gsrc = jnp.where(col == Wp - 1, gm2, gsrc)

        # ---- stage 2: conv3x3 -> instance norm (no relu)
        y2 = instance_norm(conv3x3(gsrc, w2_ref[...]), valid, False)

        # ---- residual add in f32; one full-width lane-dense store (junk lanes are finite
        #      and sliced off by the host wrapper -- no tail-zero store).
        o_ref[0] = (xp[0:C, Wp + 1:Wp + 1 + Qw] + y2).astype(o_ref.dtype)

    return kernel


def _spectral_normalize(w, key, n_iter=10):
    # TODO(synk): PyTorch nn.utils.spectral_norm keeps a persistent `u` buffer and runs one
    # power iteration per forward; here a deterministic fixed-seed power iteration is used
    # (synthetic weights, no trained state to reproduce).
    cout = w.shape[0]
    w_mat = w.reshape(cout, -1)
    u = jax.random.normal(key, (cout,), dtype=w.dtype)
    u = u / (jnp.linalg.norm(u) + 1e-12)
    v = None
    for _ in range(n_iter):
        v = w_mat.T @ u
        v = v / (jnp.linalg.norm(v) + 1e-12)
        u = w_mat @ v
        u = u / (jnp.linalg.norm(u) + 1e-12)
    sigma = u @ (w_mat @ v)
    return w / sigma


def _vmem_limit_bytes():
    try:
        cap = int(pltpu.get_tpu_info().vmem_capacity_bytes)
    except Exception:
        cap = 64 * 1024 * 1024
    return (cap * 3) // 4    # leave headroom for the double-buffered pipeline buffers


def resnet_block_forward(x_nchw, w1, b1, w2, b2, key):
    """x_nchw: (N, C, H, W) f32.  w*: (C, C, 3, 3) PyTorch conv layout.  b*: (C,) accepted for
    interface parity but unused: InstanceNorm2d(affine=False) exactly cancels the conv bias."""
    del b1, b2
    N, C, H, W = x_nchw.shape
    sub = 16 if CONV_DTYPE == jnp.bfloat16 else 8     # bf16 vreg packs [16, 128] sublanes
    Cr = _round_up(C, sub)
    Hp, Wp = H + 2, W + 2
    Lp = Hp * Wp                                      # real flat padded image length
    Qs = H * Wp - 2
    Qw = _round_up(Qs, 128)                           # conv/IN/output lane width (lane-dense)
    Lx = _round_up(2 * Wp + 2 + Qw, 128)              # input lane width (covers furthest tap)
    E = 128                                           # scratch margin before the padded image
    Lg = 2 * Wp + 2 + Qw                              # stage-2 source view width
    Gw = E + _round_up(Lg + 2, 128)                   # scratch lane width (multiple of 128)

    k1, k2 = jax.random.split(key)

    def prep_w(w, k):
        wn = _spectral_normalize(w, k)                       # (Cout, Cin, 3, 3)
        wn = jnp.transpose(wn, (0, 2, 3, 1))                 # (Cout, 3, 3, Cin)
        if Cr > C:
            wn = jnp.pad(wn, ((0, 0), (0, 0), (0, 0), (0, Cr - C)))
        return wn.reshape(C, 9 * Cr).astype(CONV_DTYPE)      # column index = tap*Cr + cin

    w1p, w2p = prep_w(w1, k1), prep_w(w2, k2)

    # Stage-1 reflection pad once on the host (HBM); flatten padded spatial onto the lane
    # axis, zero-pad channels to Cr sublanes and lanes to Lx.  No NCHW<->NHWC transposes.
    xp = jnp.pad(x_nchw, ((0, 0), (0, 0), (1, 1), (1, 1)), mode="reflect")
    if Cr > C:
        xp = jnp.pad(xp, ((0, 0), (0, Cr - C), (0, 0), (0, 0)))
    xp = xp.reshape(N, Cr, Lp).astype(jnp.float32)
    xp = jnp.pad(xp, ((0, 0), (0, 0), (0, Lx - Lp)))

    kernel = _make_resnet_block_kernel(H, W, C, Cr, Qw, Lg, E, Gw)

    out = pl.pallas_call(
        kernel,
        out_shape=jax.ShapeDtypeStruct((N, C, Qw), x_nchw.dtype),
        grid_spec=pltpu.PrefetchScalarGridSpec(
            num_scalar_prefetch=0,
            grid=(N,),                                       # one sample per step
            in_specs=[
                pl.BlockSpec((1, Cr, Lx), lambda n: (n, 0, 0)),
                pl.BlockSpec((C, 9 * Cr), lambda n: (0, 0)),
                pl.BlockSpec((C, 9 * Cr), lambda n: (0, 0)),
            ],
            out_specs=pl.BlockSpec((1, C, Qw), lambda n: (n, 0, 0)),
            scratch_shapes=[pltpu.VMEM((Cr, Gw), CONV_DTYPE)],
        ),
        compiler_params=pltpu.CompilerParams(
            dimension_semantics=("parallel",),
            vmem_limit_bytes=_vmem_limit_bytes(),
        ),
    )(xp, w1p, w2p)

    # Drop the junk columns/lanes; result is already NCHW.  (At production W=64 the kernel-side
    # store is lane-dense; this host slice is the only remaining copy -- fuse into the consumer.)
    return out[:, :, :H * Wp].reshape(N, C, H, Wp)[:, :, :, :W]


if __name__ == "__main__":
    # small shapes consistent with the module: batch=2, dim=4, spatial=16
    N, C, H, W = 2, 4, 16, 16
    key = jax.random.PRNGKey(0)
    kx, kw1, kb1, kw2, kb2, ksn = jax.random.split(key, 6)

    x = jax.random.normal(kx, (N, C, H, W), dtype=jnp.float32)
    # deterministic synthetic parameters (Conv2d(dim, dim, 3) shapes)
    w1 = jax.random.normal(kw1, (C, C, 3, 3), dtype=jnp.float32) * 0.1
    b1 = jax.random.normal(kb1, (C,), dtype=jnp.float32) * 0.1
    w2 = jax.random.normal(kw2, (C, C, 3, 3), dtype=jnp.float32) * 0.1
    b2 = jax.random.normal(kb2, (C,), dtype=jnp.float32) * 0.1

    fwd = jax.jit(resnet_block_forward)
    out = fwd(x, w1, b1, w2, b2, ksn)
    jax.block_until_ready(out)
    assert out.shape == (N, C, H, W)
    assert bool(jnp.all(jnp.isfinite(out)))
    print("KERNEL_OK")
</pallas_src>

<mosaic_0001>
module attributes {stable_mosaic.version = 11 : i64} {
  func.func @kernel(%arg0: i32, %arg1: memref<1x16x512xf32, #tpu.memory_space<vmem>>, %arg2: memref<4x144xbf16, #tpu.memory_space<vmem>>, %arg3: memref<4x144xbf16, #tpu.memory_space<vmem>>, %arg4: memref<1x4x384xf32, #tpu.memory_space<vmem>>, %arg5: memref<16x640xbf16, #tpu.memory_space<vmem>>) attributes {dimension_semantics = [#tpu.dimension_semantics<parallel>], iteration_bounds = array<i64: 2>, scalar_prefetch = 0 : i64, scratch_operands = 1 : i64, tpu.core_type = #tpu.core_type<tc>, window_params = [{transform_indices = @transform_0, window_bounds = array<i64: 1, 16, 512>}, {pipeline_mode = #tpu.pipeline_mode<synchronous>, transform_indices = @transform_1, window_bounds = array<i64: 4, 144>}, {pipeline_mode = #tpu.pipeline_mode<synchronous>, transform_indices = @transform_2, window_bounds = array<i64: 4, 144>}, {transform_indices = @transform_3, window_bounds = array<i64: 1, 4, 384>}]} {
    %c0 = arith.constant 0 : index
    %c0_0 = arith.constant 0 : index
    %c0_1 = arith.constant 0 : index
    %0 = vector.load %arg1[%c0, %c0_0, %c0_1] : memref<1x16x512xf32, #tpu.memory_space<vmem>>, vector<1x16x512xf32>
    %1 = vector.shape_cast %0 : vector<1x16x512xf32> to vector<16x512xf32>
    %2 = tpu.iota {dimensions = array<i32: 1>} : vector<1x384xi32>
    %c18_i32 = arith.constant 18 : i32
    %c0_i32 = arith.constant 0 : i32
    %3 = arith.cmpi eq, %c18_i32, %c0_i32 : i32
    %c1_i32 = arith.constant 1 : i32
    %4 = arith.select %3, %c1_i32, %c18_i32 : i32
    %5 = vector.broadcast %4 : i32 to vector<1x384xi32>
    %6 = arith.remsi %2, %5 : vector<1x384xi32>
    %c0_i32_2 = arith.constant 0 : i32
    %7 = vector.broadcast %c0_i32_2 : i32 to vector<1x384xi32>
    %8 = arith.cmpi ne, %6, %7 : vector<1x384xi32>
    %c0_i32_3 = arith.constant 0 : i32
    %9 = vector.broadcast %c0_i32_3 : i32 to vector<1x384xi32>
    %10 = arith.cmpi slt, %6, %9 : vector<1x384xi32>
    %c0_i32_4 = arith.constant 0 : i32
    %11 = arith.cmpi slt, %4, %c0_i32_4 : i32
    %12 = vector.broadcast %11 : i1 to vector<1x384xi1>
    %13 = vector.broadcast %12 : vector<1x384xi1> to vector<1x384xi1>
    %14 = arith.xori %10, %13 : vector<1x384xi1>
    %15 = arith.andi %14, %8 : vector<1x384xi1>
    %16 = vector.broadcast %4 : i32 to vector<1x384xi32>
    %17 = arith.addi %6, %16 : vector<1x384xi32>
    %18 = arith.select %15, %17, %6 : vector<1x384xi1>, vector<1x384xi32>
    %c16_i32 = arith.constant 16 : i32
    %19 = vector.broadcast %c16_i32 : i32 to vector<1x384xi32>
    %20 = arith.cmpi slt, %18, %19 : vector<1x384xi32>
    %c286_i32 = arith.constant 286 : i32
    %21 = vector.broadcast %c286_i32 : i32 to vector<1x384xi32>
    %22 = arith.cmpi slt, %2, %21 : vector<1x384xi32>
    %23 = arith.andi %20, %22 : vector<1x384xi1>
    %24 = arith.truncf %1 : vector<16x512xf32> to vector<16x512xbf16>
    %c0_5 = arith.constant 0 : index
    %c0_6 = arith.constant 0 : index
    %25 = vector.load %arg2[%c0_5, %c0_6] : memref<4x144xbf16, #tpu.memory_space<vmem>>, vector<4x144xbf16>
    %26 = vector.extract_strided_slice %24 {offsets = [0, 0], sizes = [16, 384], strides = [1, 1]} : vector<16x512xbf16> to vector<16x384xbf16>
    %27 = vector.extract_strided_slice %24 {offsets = [0, 1], sizes = [16, 384], strides = [1, 1]} : vector<16x512xbf16> to vector<16x384xbf16>
    %28 = vector.extract_strided_slice %24 {offsets = [0, 2], sizes = [16, 384], strides = [1, 1]} : vector<16x512xbf16> to vector<16x384xbf16>
    %29 = vector.extract_strided_slice %24 {offsets = [0, 18], sizes = [16, 384], strides = [1, 1]} : vector<16x512xbf16> to vector<16x384xbf16>
    %30 = vector.extract_strided_slice %24 {offsets = [0, 19], sizes = [16, 384], strides = [1, 1]} : vector<16x512xbf16> to vector<16x384xbf16>
    %31 = vector.extract_strided_slice %24 {offsets = [0, 20], sizes = [16, 384], strides = [1, 1]} : vector<16x512xbf16> to vector<16x384xbf16>
    %32 = vector.extract_strided_slice %24 {offsets = [0, 36], sizes = [16, 384], strides = [1, 1]} : vector<16x512xbf16> to vector<16x384xbf16>
    %33 = vector.extract_strided_slice %24 {offsets = [0, 37], sizes = [16, 384], strides = [1, 1]} : vector<16x512xbf16> to vector<16x384xbf16>
    %34 = vector.extract_strided_slice %24 {offsets = [0, 38], sizes = [16, 384], strides = [1, 1]} : vector<16x512xbf16> to vector<16x384xbf16>
    %35 = vector.shape_cast %26 : vector<16x384xbf16> to vector<1x16x384xbf16>
    %36 = vector.shape_cast %27 : vector<16x384xbf16> to vector<1x16x384xbf16>
    %37 = vector.shape_cast %28 : vector<16x384xbf16> to vector<1x16x384xbf16>
    %38 = vector.shape_cast %29 : vector<16x384xbf16> to vector<1x16x384xbf16>
    %39 = vector.shape_cast %30 : vector<16x384xbf16> to vector<1x16x384xbf16>
    %40 = vector.shape_cast %31 : vector<16x384xbf16> to vector<1x16x384xbf16>
    %41 = vector.shape_cast %32 : vector<16x384xbf16> to vector<1x16x384xbf16>
    %42 = vector.shape_cast %33 : vector<16x384xbf16> to vector<1x16x384xbf16>
    %43 = vector.shape_cast %34 : vector<16x384xbf16> to vector<1x16x384xbf16>
    %44 = tpu.concatenate %35, %36, %37, %38, %39, %40, %41, %42, %43 in 0 : vector<1x16x384xbf16>, vector<1x16x384xbf16>, vector<1x16x384xbf16>, vector<1x16x384xbf16>, vector<1x16x384xbf16>, vector<1x16x384xbf16>, vector<1x16x384xbf16>, vector<1x16x384xbf16>, vector<1x16x384xbf16> -> vector<9x16x384xbf16>
    %45 = vector.shape_cast %44 : vector<9x16x384xbf16> to vector<144x384xbf16>
    %cst = arith.constant dense<0.000000e+00> : vector<4x384xf32>
    %46 = tpu.matmul %25, %45, %cst {dimension_numbers = #tpu.dot_dimension_numbers<[1], [0], [0], [1], [0, 0, 1, 1], [], []>} : vector<4x144xbf16>, vector<144x384xbf16>, vector<4x384xf32> -> vector<4x384xf32>
    %cst_7 = arith.constant 0.000000e+00 : f32
    %47 = vector.shape_cast %23 : vector<1x384xi1> to vector<1x384xi1>
    %48 = vector.broadcast %47 : vector<1x384xi1> to vector<4x384xi1>
    %49 = vector.broadcast %cst_7 : f32 to vector<4x384xf32>
    %50 = arith.select %48, %46, %49 : vector<4x384xi1>, vector<4x384xf32>
    %cst_8 = arith.constant dense<0.000000e+00> : vector<4xf32>
    %51 = vector.multi_reduction <add>, %50, %cst_8 [1] : vector<4x384xf32> to vector<4xf32>
    %52 = vector.shape_cast %51 : vector<4xf32> to vector<4x1xf32>
    %53 = arith.mulf %50, %50 : vector<4x384xf32>
    %cst_9 = arith.constant dense<0.000000e+00> : vector<4xf32>
    %54 = vector.multi_reduction <add>, %53, %cst_9 [1] : vector<4x384xf32> to vector<4xf32>
    %55 = vector.shape_cast %54 : vector<4xf32> to vector<4x1xf32>
    %cst_10 = arith.constant 3.906250e-03 : f32
    %56 = vector.broadcast %cst_10 : f32 to vector<4x1xf32>
    %57 = arith.mulf %52, %56 : vector<4x1xf32>
    %cst_11 = arith.constant 3.906250e-03 : f32
    %58 = vector.broadcast %cst_11 : f32 to vector<4x1xf32>
    %59 = arith.mulf %55, %58 : vector<4x1xf32>
    %60 = arith.mulf %57, %57 : vector<4x1xf32>
    %61 = arith.subf %59, %60 : vector<4x1xf32>
    %cst_12 = arith.constant 0.000000e+00 : f32
    %62 = vector.broadcast %cst_12 : f32 to vector<4x1xf32>
    %63 = arith.maximumf %61, %62 : vector<4x1xf32>
    %64 = vector.broadcast %57 : vector<4x1xf32> to vector<4x384xf32>
    %65 = arith.subf %46, %64 : vector<4x384xf32>
    %cst_13 = arith.constant 9.99999974E-6 : f32
    %66 = vector.broadcast %cst_13 : f32 to vector<4x1xf32>
    %67 = arith.addf %63, %66 : vector<4x1xf32>
    %68 = math.rsqrt %67 : vector<4x1xf32>
    %69 = vector.broadcast %68 : vector<4x1xf32> to vector<4x384xf32>
    %70 = arith.mulf %65, %69 : vector<4x384xf32>
    %cst_14 = arith.constant 0.000000e+00 : f32
    %71 = vector.broadcast %cst_14 : f32 to vector<4x384xf32>
    %72 = arith.maximumf %70, %71 : vector<4x384xf32>
    %cst_15 = arith.constant 0.000000e+00 : bf16
    %73 = vector.broadcast %cst_15 : bf16 to vector<12x640xbf16>
    %c4 = arith.constant 4 : index
    %c0_16 = arith.constant 0 : index
    %74 = vector.load %arg5[%c4, %c0_16] : memref<16x640xbf16, #tpu.memory_space<vmem>>, vector<12x640xbf16>
    tpu.vector_store %arg5[%c4, %c0_16], %73 {strides = array<i32>} : memref<16x640xbf16, #tpu.memory_space<vmem>>, vector<12x640xbf16>,
    %75 = arith.truncf %72 : vector<4x384xf32> to vector<4x384xbf16>
    %c0_17 = arith.constant 0 : index
    %c147 = arith.constant 147 : index
    %76 = vector.load %arg5[%c0_17, %c147] : memref<16x640xbf16, #tpu.memory_space<vmem>>, vector<4x384xbf16>
    tpu.vector_store %arg5[%c0_17, %c147], %75 {strides = array<i32>} : memref<16x640xbf16, #tpu.memory_space<vmem>>, vector<4x384xbf16>,
    %c0_18 = arith.constant 0 : index
    %c164 = arith.constant 164 : index
    %77 = vector.load %arg5[%c0_18, %c164] : memref<16x640xbf16, #tpu.memory_space<vmem>>, vector<16x18xbf16>
    %c0_19 = arith.constant 0 : index
    %c128 = arith.constant 128 : index
    %78 = vector.load %arg5[%c0_19, %c128] : memref<16x640xbf16, #tpu.memory_space<vmem>>, vector<16x18xbf16>
    tpu.vector_store %arg5[%c0_19, %c128], %77 {strides = array<i32>} : memref<16x640xbf16, #tpu.memory_space<vmem>>, vector<16x18xbf16>,
    %c0_20 = arith.constant 0 : index
    %c398 = arith.constant 398 : index
    %79 = vector.load %arg5[%c0_20, %c398] : memref<16x640xbf16, #tpu.memory_space<vmem>>, vector<16x18xbf16>
    %c0_21 = arith.constant 0 : index
    %c434 = arith.constant 434 : index
    %80 = vector.load %arg5[%c0_21, %c434] : memref<16x640xbf16, #tpu.memory_space<vmem>>, vector<16x18xbf16>
    tpu.vector_store %arg5[%c0_21, %c434], %79 {strides = array<i32>} : memref<16x640xbf16, #tpu.memory_space<vmem>>, vector<16x18xbf16>,
    %c0_22 = arith.constant 0 : index
    %c128_23 = arith.constant 128 : index
    %81 = vector.load %arg5[%c0_22, %c128_23] : memref<16x640xbf16, #tpu.memory_space<vmem>>, vector<16x422xbf16>
    %c0_24 = arith.constant 0 : index
    %c130 = arith.constant 130 : index
    %82 = vector.load %arg5[%c0_24, %c130] : memref<16x640xbf16, #tpu.memory_space<vmem>>, vector<16x422xbf16>
    %c0_25 = arith.constant 0 : index
    %c126 = arith.constant 126 : index
    %83 = vector.load %arg5[%c0_25, %c126] : memref<16x640xbf16, #tpu.memory_space<vmem>>, vector<16x422xbf16>
    %84 = tpu.iota {dimensions = array<i32: 1>} : vector<1x422xi32>
    %c18_i32_26 = arith.constant 18 : i32
    %c0_i32_27 = arith.constant 0 : i32
    %85 = arith.cmpi eq, %c18_i32_26, %c0_i32_27 : i32
    %c1_i32_28 = arith.constant 1 : i32
    %86 = arith.select %85, %c1_i32_28, %c18_i32_26 : i32
    %87 = vector.broadcast %86 : i32 to vector<1x422xi32>
    %88 = arith.remsi %84, %87 : vector<1x422xi32>
    %c0_i32_29 = arith.constant 0 : i32
    %89 = vector.broadcast %c0_i32_29 : i32 to vector<1x422xi32>
    %90 = arith.cmpi ne, %88, %89 : vector<1x422xi32>
    %c0_i32_30 = arith.constant 0 : i32
    %91 = vector.broadcast %c0_i32_30 : i32 to vector<1x422xi32>
    %92 = arith.cmpi slt, %88, %91 : vector<1x422xi32>
    %c0_i32_31 = arith.constant 0 : i32
    %93 = arith.cmpi slt, %86, %c0_i32_31 : i32
    %94 = vector.broadcast %93 : i1 to vector<1x422xi1>
    %95 = vector.broadcast %94 : vector<1x422xi1> to vector<1x422xi1>
    %96 = arith.xori %92, %95 : vector<1x422xi1>
    %97 = arith.andi %96, %90 : vector<1x422xi1>
    %98 = vector.broadcast %86 : i32 to vector<1x422xi32>
    %99 = arith.addi %88, %98 : vector<1x422xi32>
    %100 = arith.select %97, %99, %88 : vector<1x422xi1>, vector<1x422xi32>
    %c0_i32_32 = arith.constant 0 : i32
    %101 = vector.broadcast %c0_i32_32 : i32 to vector<1x422xi32>
    %102 = arith.cmpi eq, %100, %101 : vector<1x422xi32>
    %103 = vector.shape_cast %102 : vector<1x422xi1> to vector<1x422xi1>
    %104 = vector.broadcast %103 : vector<1x422xi1> to vector<16x422xi1>
    %105 = arith.select %104, %82, %81 : vector<16x422xi1>, vector<16x422xbf16>
    %c17_i32 = arith.constant 17 : i32
    %106 = vector.broadcast %c17_i32 : i32 to vector<1x422xi32>
    %107 = arith.cmpi eq, %100, %106 : vector<1x422xi32>
    %108 = vector.shape_cast %107 : vector<1x422xi1> to vector<1x422xi1>
    %109 = vector.broadcast %108 : vector<1x422xi1> to vector<16x422xi1>
    %110 = arith.select %109, %83, %105 : vector<16x422xi1>, vector<16x422xbf16>
    %c0_33 = arith.constant 0 : index
    %c0_34 = arith.constant 0 : index
    %111 = vector.load %arg3[%c0_33, %c0_34] : memref<4x144xbf16, #tpu.memory_space<vmem>>, vector<4x144xbf16>
    %112 = vector.extract_strided_slice %110 {offsets = [0, 0], sizes = [16, 384], strides = [1, 1]} : vector<16x422xbf16> to vector<16x384xbf16>
    %113 = vector.extract_strided_slice %110 {offsets = [0, 1], sizes = [16, 384], strides = [1, 1]} : vector<16x422xbf16> to vector<16x384xbf16>
    %114 = vector.extract_strided_slice %110 {offsets = [0, 2], sizes = [16, 384], strides = [1, 1]} : vector<16x422xbf16> to vector<16x384xbf16>
    %115 = vector.extract_strided_slice %110 {offsets = [0, 18], sizes = [16, 384], strides = [1, 1]} : vector<16x422xbf16> to vector<16x384xbf16>
    %116 = vector.extract_strided_slice %110 {offsets = [0, 19], sizes = [16, 384], strides = [1, 1]} : vector<16x422xbf16> to vector<16x384xbf16>
    %117 = vector.extract_strided_slice %110 {offsets = [0, 20], sizes = [16, 384], strides = [1, 1]} : vector<16x422xbf16> to vector<16x384xbf16>
    %118 = vector.extract_strided_slice %110 {offsets = [0, 36], sizes = [16, 384], strides = [1, 1]} : vector<16x422xbf16> to vector<16x384xbf16>
    %119 = vector.extract_strided_slice %110 {offsets = [0, 37], sizes = [16, 384], strides = [1, 1]} : vector<16x422xbf16> to vector<16x384xbf16>
    %120 = vector.extract_strided_slice %110 {offsets = [0, 38], sizes = [16, 384], strides = [1, 1]} : vector<16x422xbf16> to vector<16x384xbf16>
    %121 = vector.shape_cast %112 : vector<16x384xbf16> to vector<1x16x384xbf16>
    %122 = vector.shape_cast %113 : vector<16x384xbf16> to vector<1x16x384xbf16>
    %123 = vector.shape_cast %114 : vector<16x384xbf16> to vector<1x16x384xbf16>
    %124 = vector.shape_cast %115 : vector<16x384xbf16> to vector<1x16x384xbf16>
    %125 = vector.shape_cast %116 : vector<16x384xbf16> to vector<1x16x384xbf16>
    %126 = vector.shape_cast %117 : vector<16x384xbf16> to vector<1x16x384xbf16>
    %127 = vector.shape_cast %118 : vector<16x384xbf16> to vector<1x16x384xbf16>
    %128 = vector.shape_cast %119 : vector<16x384xbf16> to vector<1x16x384xbf16>
    %129 = vector.shape_cast %120 : vector<16x384xbf16> to vector<1x16x384xbf16>
    %130 = tpu.concatenate %121, %122, %123, %124, %125, %126, %127, %128, %129 in 0 : vector<1x16x384xbf16>, vector<1x16x384xbf16>, vector<1x16x384xbf16>, vector<1x16x384xbf16>, vector<1x16x384xbf16>, vector<1x16x384xbf16>, vector<1x16x384xbf16>, vector<1x16x384xbf16>, vector<1x16x384xbf16> -> vector<9x16x384xbf16>
    %131 = vector.shape_cast %130 : vector<9x16x384xbf16> to vector<144x384xbf16>
    %cst_35 = arith.constant dense<0.000000e+00> : vector<4x384xf32>
    %132 = tpu.matmul %111, %131, %cst_35 {dimension_numbers = #tpu.dot_dimension_numbers<[1], [0], [0], [1], [0, 0, 1, 1], [], []>} : vector<4x144xbf16>, vector<144x384xbf16>, vector<4x384xf32> -> vector<4x384xf32>
    %cst_36 = arith.constant 0.000000e+00 : f32
    %133 = vector.shape_cast %23 : vector<1x384xi1> to vector<1x384xi1>
    %134 = vector.broadcast %133 : vector<1x384xi1> to vector<4x384xi1>
    %135 = vector.broadcast %cst_36 : f32 to vector<4x384xf32>
    %136 = arith.select %134, %132, %135 : vector<4x384xi1>, vector<4x384xf32>
    %cst_37 = arith.constant dense<0.000000e+00> : vector<4xf32>
    %137 = vector.multi_reduction <add>, %136, %cst_37 [1] : vector<4x384xf32> to vector<4xf32>
    %138 = vector.shape_cast %137 : vector<4xf32> to vector<4x1xf32>
    %139 = arith.mulf %136, %136 : vector<4x384xf32>
    %cst_38 = arith.constant dense<0.000000e+00> : vector<4xf32>
    %140 = vector.multi_reduction <add>, %139, %cst_38 [1] : vector<4x384xf32> to vector<4xf32>
    %141 = vector.shape_cast %140 : vector<4xf32> to vector<4x1xf32>
    %cst_39 = arith.constant 3.906250e-03 : f32
    %142 = vector.broadcast %cst_39 : f32 to vector<4x1xf32>
    %143 = arith.mulf %138, %142 : vector<4x1xf32>
    %cst_40 = arith.constant 3.906250e-03 : f32
    %144 = vector.broadcast %cst_40 : f32 to vector<4x1xf32>
    %145 = arith.mulf %141, %144 : vector<4x1xf32>
    %146 = arith.mulf %143, %143 : vector<4x1xf32>
    %147 = arith.subf %145, %146 : vector<4x1xf32>
    %cst_41 = arith.constant 0.000000e+00 : f32
    %148 = vector.broadcast %cst_41 : f32 to vector<4x1xf32>
    %149 = arith.maximumf %147, %148 : vector<4x1xf32>
    %150 = vector.broadcast %143 : vector<4x1xf32> to vector<4x384xf32>
    %151 = arith.subf %132, %150 : vector<4x384xf32>
    %cst_42 = arith.constant 9.99999974E-6 : f32
    %152 = vector.broadcast %cst_42 : f32 to vector<4x1xf32>
    %153 = arith.addf %149, %152 : vector<4x1xf32>
    %154 = math.rsqrt %153 : vector<4x1xf32>
    %155 = vector.broadcast %154 : vector<4x1xf32> to vector<4x384xf32>
    %156 = arith.mulf %151, %155 : vector<4x384xf32>
    %157 = vector.extract_strided_slice %1 {offsets = [0, 19], sizes = [4, 384], strides = [1, 1]} : vector<16x512xf32> to vector<4x384xf32>
    %158 = arith.addf %157, %156 : vector<4x384xf32>
    %c0_43 = arith.constant 0 : index
    %c0_44 = arith.constant 0 : index
    %c0_45 = arith.constant 0 : index
    %159 = vector.load %arg4[%c0_43, %c0_44, %c0_45] : memref<1x4x384xf32, #tpu.memory_space<vmem>>, vector<1x4x384xf32>
    %160 = vector.shape_cast %159 : vector<1x4x384xf32> to vector<4x384xf32>
    %161 = vector.shape_cast %158 : vector<4x384xf32> to vector<1x4x384xf32>
    tpu.vector_store %arg4[%c0_43, %c0_44, %c0_45], %161 {strides = array<i32>} : memref<1x4x384xf32, #tpu.memory_space<vmem>>, vector<1x4x384xf32>,
    return
  }
  func.func @transform_0(%arg0: i32) -> (i32, i32, i32) {
    %c0_i32 = arith.constant 0 : i32
    %c0_i32_0 = arith.constant 0 : i32
    %c0_i32_1 = arith.constant 0 : i32
    return %arg0, %c0_i32, %c0_i32_0 : i32, i32, i32
  }
  func.func @transform_1(%arg0: i32) -> (i32, i32) {
    %c0_i32 = arith.constant 0 : i32
    %c0_i32_0 = arith.constant 0 : i32
    %c0_i32_1 = arith.constant 0 : i32
    return %c0_i32, %c0_i32_0 : i32, i32
  }
  func.func @transform_2(%arg0: i32) -> (i32, i32) {
    %c0_i32 = arith.constant 0 : i32
    %c0_i32_0 = arith.constant 0 : i32
    %c0_i32_1 = arith.constant 0 : i32
    return %c0_i32, %c0_i32_0 : i32, i32
  }
  func.func @transform_3(%arg0: i32) -> (i32, i32, i32) {
    %c0_i32 = arith.constant 0 : i32
    %c0_i32_0 = arith.constant 0 : i32
    %c0_i32_1 = arith.constant 0 : i32
    return %arg0, %c0_i32, %c0_i32_0 : i32, i32, i32
  }
}

</mosaic_0001>

<llo_original>
// kernel: resnet_block_forward.3
$region0: #{resnet_block_forward.3}
  #allocation0 [shape = 'u32[]', space=smem, size = 0x4, offset = 0x4, fixed_abs, tag = 'smem constant byte address 0x4 - core index']
  #allocation1 [shape = 'u32[144,128]{1,0:T(1,128)}', space=vmem, size = 0x12000, scoped, tag = 'internal scratch']
  #allocation2 [shape = 'bf16[16,640]{1,0:T(8,128)(2,1)}', space=vmem, size = 0x5000, scoped, tag = 'scratch operand']
  %s0 = inlined_call_operand.vmem [shape: f32[2,16,512], index: 0, kind: input, shape index: {}]
  %s1 = inlined_call_operand.vmem [shape: bf16[4,144], index: 1, kind: input, shape index: {}]
  %s2 = inlined_call_operand.vmem [shape: bf16[4,144], index: 2, kind: input, shape index: {}]
  %s3 = inlined_call_operand.vmem [shape: f32[2,4,384], index: 3, kind: output, shape index: {}]
  %s4 = sld [smem:[#allocation0]]
  $region45: #{resnet_block_forward.3} parent=0
    _
  %s6 = ssub.s32 1, %s4
  %s7 = scalar_select 0, %s6, %s4
  loop: start=0, step=1, limit=4
  $region2: #{resnet_block_forward.3} parent=0 // loop_pre_header
    _
  $region3: #{resnet_block_forward.3} parent=0 // loop_header
    %s9 = sphi 0, %s13
    %p10 = scmp.ge.s32.totalorder %s9, 4
    %s19 = sphi 0, %s21
    %s22 = sphi 0, %s19
    %s23 = sphi 0, %s22
    %s39 = sphi 0, %s23
    %s43 = sphi 0, %s43
    %s45 = sphi 0, %s43
    %s46 = sphi 0, %s45
    %s60 = sphi 0, %s46
    %s64 = sphi 0, %s64
    %s66 = sphi 0, %s64
    %s67 = sphi 0, %s66
    %s81 = sphi 0, %s67
    %s87 = sphi 0, %s89
    %s90 = sphi 0, %s87
    %s91 = sphi 0, %s90
    %s107 = sphi 0, %s91
  $region4: #{resnet_block_forward.3} parent=0 // loop_header_branch
    %12 = sbr.rel (%p10) target = $region8
  $region5: #{resnet_block_forward.3} parent=0 // loop_body
    %s14 = ssub.s32 %s9, 1
    %s15 = ssub.s32 %s9, 2
    %s16 = sadd.s32 %s9, 1
    %s17 = ssub.s32 %s9, %s16
    %p18 = scmp.eq.s32.totalorder %s17, 0
    %s20 = sadd.s32 %s19, 1
    %s21 = scalar_select %p18, %s19, %s20
    %p24 = pneg %p18
    %p25 = scmp.eq.s32.totalorder %s9, 1
    %p26 = por %p24, %p25
    %p27 = scmp.ne.s32.totalorder %s19, %s22
    %p28 = scmp.eq.s32.totalorder %s9, 0
    %p29 = por %p27, %p28
    %p30 = scmp.ne.s32.totalorder %s19, %s22
    %p31 = scmp.eq.s32.totalorder %s14, 1
    %p32 = por %p30, %p31
    %p33 = scmp.ne.s32.totalorder %s22, %s23
    %p34 = scmp.eq.s32.totalorder %s14, 0
    %p35 = por %p33, %p34
    %p36 = scmp.ne.s32.totalorder %s22, %s23
    %p37 = scmp.eq.s32.totalorder %s15, 1
    %p38 = por %p36, %p37
    %p40 = scmp.ne.s32.totalorder %s23, %s39
    %p41 = scmp.eq.s32.totalorder %s15, 0
    %p42 = por %p40, %p41
    %s44 = sadd.s32 %s43, 1
    %p47 = scmp.eq.s32.totalorder %s9, 1
    %p48 = scmp.ne.s32.totalorder %s43, %s45
    %p49 = scmp.eq.s32.totalorder %s9, 0
    %p50 = por %p48, %p49
    %p51 = scmp.ne.s32.totalorder %s43, %s45
    %p52 = scmp.eq.s32.totalorder %s14, 1
    %p53 = por %p51, %p52
    %p54 = scmp.ne.s32.totalorder %s45, %s46
    %p55 = scmp.eq.s32.totalorder %s14, 0
    %p56 = por %p54, %p55
    %p57 = scmp.ne.s32.totalorder %s45, %s46
    %p58 = scmp.eq.s32.totalorder %s15, 1
    %p59 = por %p57, %p58
    %p61 = scmp.ne.s32.totalorder %s46, %s60
    %p62 = scmp.eq.s32.totalorder %s15, 0
    %p63 = por %p61, %p62
    %s65 = sadd.s32 %s64, 1
    %p68 = scmp.eq.s32.totalorder %s9, 1
    %p69 = scmp.ne.s32.totalorder %s64, %s66
    %p70 = scmp.eq.s32.totalorder %s9, 0
    %p71 = por %p69, %p70
    %p72 = scmp.ne.s32.totalorder %s64, %s66
    %p73 = scmp.eq.s32.totalorder %s14, 1
    %p74 = por %p72, %p73
    %p75 = scmp.ne.s32.totalorder %s66, %s67
    %p76 = scmp.eq.s32.totalorder %s14, 0
    %p77 = por %p75, %p76
    %p78 = scmp.ne.s32.totalorder %s66, %s67
    %p79 = scmp.eq.s32.totalorder %s15, 1
    %p80 = por %p78, %p79
    %p82 = scmp.ne.s32.totalorder %s67, %s81
    %p83 = scmp.eq.s32.totalorder %s15, 0
    %p84 = por %p82, %p83
    %s85 = ssub.s32 %s9, %s16
    %p86 = scmp.eq.s32.totalorder %s85, 0
    %s88 = sadd.s32 %s87, 1
    %s89 = scalar_select %p86, %s87, %s88
    %p92 = pneg %p86
    %p93 = scmp.eq.s32.totalorder %s9, 1
    %p94 = por %p92, %p93
    %p95 = scmp.ne.s32.totalorder %s87, %s90
    %p96 = scmp.eq.s32.totalorder %s9, 0
    %p97 = por %p95, %p96
    %p98 = scmp.ne.s32.totalorder %s87, %s90
    %p99 = scmp.eq.s32.totalorder %s14, 1
    %p100 = por %p98, %p99
    %p101 = scmp.ne.s32.totalorder %s90, %s91
    %p102 = scmp.eq.s32.totalorder %s14, 0
    %p103 = por %p101, %p102
    %p104 = scmp.ne.s32.totalorder %s90, %s91
    %p105 = scmp.eq.s32.totalorder %s15, 1
    %p106 = por %p104, %p105
    %p108 = scmp.ne.s32.totalorder %s91, %s107
    %p109 = scmp.eq.s32.totalorder %s15, 0
    %p110 = por %p108, %p109
    %p111 = scmp.le.s32.totalorder 1, %s9
    %p112 = scmp.lt.s32.totalorder %s9, 3
    %p113 = pnand %p111, %p112
    %p114 = pneg %p113
    // Predicated region
    $region9: #{resnet_block_forward.3} parent=5 // pred_check
      _
    $region10: #{resnet_block_forward.3} parent=5 // pred_check_branch
      %116 = sbr.rel (%p113) target = $region12
    $region11: #{resnet_block_forward.3} parent=5 // pred_region
      %s117 = ssub.s32 %s9, 1
      // Predicated region
      $region13: #{resnet_block_forward.3} parent=11 // pred_check
        %p118 = pneg %p56
      $region14: #{resnet_block_forward.3} parent=11 // pred_check_branch
        %120 = sbr.rel (%p118) target = $region16
      $region15: #{resnet_block_forward.3} parent=11 // pred_region
        _
      $region16: #{resnet_block_forward.3} parent=11 // pred_fallthru
        _
      // Predicated region
      $region17: #{resnet_block_forward.3} parent=11 // pred_check
        %p121 = pneg %p77
      $region18: #{resnet_block_forward.3} parent=11 // pred_check_branch
        %123 = sbr.rel (%p121) target = $region20
      $region19: #{resnet_block_forward.3} parent=11 // pred_region
        _
      $region20: #{resnet_block_forward.3} parent=11 // pred_fallthru
        _
    $region12: #{resnet_block_forward.3} parent=5 // pred_fallthru
      _
    %p124 = scmp.lt.s32.totalorder %s9, 2
    // Predicated region
    $region21: #{resnet_block_forward.3} parent=5 // pred_check
      %p125 = pneg %p124
    $region22: #{resnet_block_forward.3} parent=5 // pred_check_branch
      %127 = sbr.rel (%p125) target = $region24
    $region23: #{resnet_block_forward.3} parent=5 // pred_region
      // Predicated region
      $region25: #{resnet_block_forward.3} parent=23 // pred_check
        %p128 = pneg %p29
      $region26: #{resnet_block_forward.3} parent=23 // pred_check_branch
        %130 = sbr.rel (%p128) target = $region28
      $region27: #{resnet_block_forward.3} parent=23 // pred_region
        %p131 = scmp.lt.s32.totalorder %s9, 1
        %s132 = scalar_select %p131, %s9, 1
        %s133 = smul.addr %s132, 8
        %s134 = smul.addr %s133, 8
        %s135 = scalar_lea.vmem %s0, %s134
      $region28: #{resnet_block_forward.3} parent=23 // pred_fallthru
        _
    $region24: #{resnet_block_forward.3} parent=5 // pred_fallthru
      _
    %p136 = scmp.le.s32.totalorder 1, %s9
    %p137 = scmp.lt.s32.totalorder %s9, 3
    %p138 = pnand %p136, %p137
    %p139 = pneg %p138
    // Predicated region
    $region29: #{resnet_block_forward.3} parent=5 // pred_check
      _
    $region30: #{resnet_block_forward.3} parent=5 // pred_check_branch
      %141 = sbr.rel (%p138) target = $region32
    $region31: #{resnet_block_forward.3} parent=5 // pred_region
      %s142 = ssub.s32 %s9, 1
      %p143 = scmp.lt.s32.totalorder %s14, 1
      %s144 = scalar_select %p143, %s14, 1
      %s145 = smul.addr %s144, 8
      %s146 = smul.addr %s145, 8
      %s147 = scalar_lea.vmem %s0, %s146
      %p148 = pneg %p35
      %p149 = pneg %p32
      %p150 = pneg %p56
      %p151 = pneg %p53
      %p152 = pneg %p77
      %p153 = pneg %p74
      %p154 = pneg %p103
      %p155 = pneg %p100
      %p156 = scmp.lt.s32.totalorder %s14, 1
      %s157 = scalar_select %p156, %s14, 1
      %s158 = smul.addr %s157, 3
      %s159 = smul.addr %s158, 4
      %s160 = scalar_lea.vmem %s3, %s159
      %p161 = scmp.lt.s32.totalorder %s14, 1
      %s162 = scalar_select %p161, %s14, 1
      %s163 = smul.addr %s162, 8
      %s164 = smul.addr %s163, 8
      %s165 = scalar_lea.vmem %s0, %s164
      %p166 = scmp.lt.s32.totalorder %s14, 1
      %s167 = scalar_select %p166, %s14, 1
      %s168 = smul.addr %s167, 3
      %s169 = smul.addr %s168, 4
      %s170 = scalar_lea.vmem %s3, %s169
      %v174 = vld [vmem:[%s165] sm:$0xff]
      %v175 = vld [vmem:[%s165 + $0x8] sm:$0xff]
      %v176 = vld [vmem:[%s165 + $0x10] sm:$0xff]
      %v177 = vld [vmem:[%s165 + $0x18] sm:$0xff]
      %v178 = vld [vmem:[%s165 + $0x20] sm:$0xff]
      %v179 = vld [vmem:[%s165 + $0x28] sm:$0xff]
      %v180 = vld [vmem:[%s165 + $0x30] sm:$0xff]
      %v181 = vld [vmem:[%s165 + $0x38] sm:$0xff]
      %v182 = vlaneseq
      %v183 = vand.u32 %v182, 127
      %v184 = vadd.s32 %v183, 128
      %v185 = vadd.s32 %v183, 256
      %vm186 = vcmp.lt.s32.totalorder %v183, 0
      %v187 = vsub.s32 0, %v183
      %v188 = vsel %vm186, %v187, %v183
      %v189 = vmul.u32.u64.compose %v188, 3817748708
      %v190 = vextract.low.u32 %v189
      %v191 = vextract.high.u32 %v189
      %v192 = vshrl.u32 %v191, 4
      %v193 = vmul.u32 %v192, 18
      %v194 = vsub.s32 %v188, %v193
      %v195 = vsub.s32 0, %v194
      %v196 = vsel %vm186, %v195, %v194
      %vm197 = vcmp.lt.s32.totalorder %v184, 0
      %v198 = vsub.s32 0, %v184
      %v199 = vsel %vm197, %v198, %v184
      %v200 = vmul.u32.u64.compose %v199, 3817748708
      %v201 = vextract.low.u32 %v200
      %v202 = vextract.high.u32 %v200
      %v203 = vshrl.u32 %v202, 4
      %v204 = vmul.u32 %v203, 18
      %v205 = vsub.s32 %v199, %v204
      %v206 = vsub.s32 0, %v205
      %v207 = vsel %vm197, %v206, %v205
      %vm208 = vcmp.lt.s32.totalorder %v185, 0
      %v209 = vsub.s32 0, %v185
      %v210 = vsel %vm208, %v209, %v185
      %v211 = vmul.u32.u64.compose %v210, 3817748708
      %v212 = vextract.low.u32 %v211
      %v213 = vextract.high.u32 %v211
      %v214 = vshrl.u32 %v213, 4
      %v215 = vmul.u32 %v214, 18
      %v216 = vsub.s32 %v210, %v215
      %v217 = vsub.s32 0, %v216
      %v218 = vsel %vm208, %v217, %v216
      %vm219 = vcmp.ne.s32.totalorder %v196, 0
      %vm220 = vcmp.ne.s32.totalorder %v207, 0
      %vm221 = vcmp.ne.s32.totalorder %v218, 0
      %vm222 = vcmp.lt.s32.totalorder %v196, 0
      %vm223 = vcmp.lt.s32.totalorder %v207, 0
      %vm224 = vcmp.lt.s32.totalorder %v218, 0
      %vm225 = vmand %vm222, %vm219
      %vm226 = vmand %vm223, %vm220
      %vm227 = vmand %vm224, %vm221
      %v228 = vadd.s32 %v196, 18
      %v229 = vadd.s32 %v207, 18
      %v230 = vadd.s32 %v218, 18
      %v231 = vsel %vm225, %v228, %v196
      %v232 = vsel %vm226, %v229, %v207
      %v233 = vsel %vm227, %v230, %v218
      %vm234 = vcmp.lt.s32.totalorder %v231, 16
      %vm235 = vcmp.lt.s32.totalorder %v232, 16
      %vm236 = vcmp.lt.s32.totalorder %v233, 16
      %vm237 = vcmp.lt.s32.totalorder %v183, 286
      %vm238 = vcmp.lt.s32.totalorder %v184, 286
      %vm239 = vcmp.lt.s32.totalorder %v185, 286
      %vm240 = vmand %vm234, %vm237
      %vm241 = vmand %vm235, %vm238
      %vm242 = vmand %vm236, %vm239
      %v243 = vpack.c.bf16 %v178, %v174
      %v244 = vpack.c.bf16 %v179, %v175
      %v245 = vpack.c.bf16 %v180, %v176
      %v246 = vpack.c.bf16 %v181, %v177
      %v247 = vld [vmem:[%s1] sm:$0xf]
      %252 = vrot.lane.b32.xlu0 %v243, 127
      %v253 = vpop.permute.xlu0 %252
      %254 = vrot.lane.b32.xlu0 %v244, 127
      %v255 = vpop.permute.xlu0 %254
      %256 = vrot.lane.b32.xlu0 %v245, 127
      %v257 = vpop.permute.xlu0 %256
      %258 = vrot.lane.b32.xlu0 %v246, 127
      %v259 = vpop.permute.xlu0 %258
      %vm260 = vcmask 1039360
      %v261 = vsel %vm260, %v253, %v255
      %v262 = vsel %vm260, %v255, %v257
      %v263 = vsel %vm260, %v257, %v259
      %267 = vrot.lane.b32.xlu0 %v243, 126
      %v268 = vpop.permute.xlu0 %267
      %269 = vrot.lane.b32.xlu0 %v244, 126
      %v270 = vpop.permute.xlu0 %269
      %271 = vrot.lane.b32.xlu0 %v245, 126
      %v272 = vpop.permute.xlu0 %271
      %273 = vrot.lane.b32.xlu0 %v246, 126
      %v274 = vpop.permute.xlu0 %273
      %vm275 = vcmask 1031168
      %v276 = vsel %vm275, %v268, %v270
      %v277 = vsel %vm275, %v270, %v272
      %v278 = vsel %vm275, %v272, %v274
      %282 = vrot.lane.b32.xlu0 %v243, 110
      %v283 = vpop.permute.xlu0 %282
      %284 = vrot.lane.b32.xlu0 %v244, 110
      %v285 = vpop.permute.xlu0 %284
      %286 = vrot.lane.b32.xlu0 %v245, 110
      %v287 = vpop.permute.xlu0 %286
      %288 = vrot.lane.b32.xlu0 %v246, 110
      %v289 = vpop.permute.xlu0 %288
      %vm290 = vcmask 900096
      %v291 = vsel %vm290, %v283, %v285
      %v292 = vsel %vm290, %v285, %v287
      %v293 = vsel %vm290, %v287, %v289
      %297 = vrot.lane.b32.xlu0 %v243, 109
      %v298 = vpop.permute.xlu0 %297
      %299 = vrot.lane.b32.xlu0 %v244, 109
      %v300 = vpop.permute.xlu0 %299
      %301 = vrot.lane.b32.xlu0 %v245, 109
      %v302 = vpop.permute.xlu0 %301
      %303 = vrot.lane.b32.xlu0 %v246, 109
      %v304 = vpop.permute.xlu0 %303
      %vm305 = vcmask 891904
      %v306 = vsel %vm305, %v298, %v300
      %v307 = vsel %vm305, %v300, %v302
      %v308 = vsel %vm305, %v302, %v304
      %312 = vrot.lane.b32.xlu0 %v243, 108
      %v313 = vpop.permute.xlu0 %312
      %314 = vrot.lane.b32.xlu0 %v244, 108
      %v315 = vpop.permute.xlu0 %314
      %316 = vrot.lane.b32.xlu0 %v245, 108
      %v317 = vpop.permute.xlu0 %316
      %318 = vrot.lane.b32.xlu0 %v246, 108
      %v319 = vpop.permute.xlu0 %318
      %vm320 = vcmask 883712
      %v321 = vsel %vm320, %v313, %v315
      %v322 = vsel %vm320, %v315, %v317
      %v323 = vsel %vm320, %v317, %v319
      %327 = vrot.lane.b32.xlu0 %v243, 92
      %v328 = vpop.permute.xlu0 %327
      %329 = vrot.lane.b32.xlu0 %v244, 92
      %v330 = vpop.permute.xlu0 %329
      %331 = vrot.lane.b32.xlu0 %v245, 92
      %v332 = vpop.permute.xlu0 %331
      %333 = vrot.lane.b32.xlu0 %v246, 92
      %v334 = vpop.permute.xlu0 %333
      %vm335 = vcmask 752640
      %v336 = vsel %vm335, %v328, %v330
      %v337 = vsel %vm335, %v330, %v332
      %v338 = vsel %vm335, %v332, %v334
      %342 = vrot.lane.b32.xlu0 %v243, 91
      %v343 = vpop.permute.xlu0 %342
      %344 = vrot.lane.b32.xlu0 %v244, 91
      %v345 = vpop.permute.xlu0 %344
      %346 = vrot.lane.b32.xlu0 %v245, 91
      %v347 = vpop.permute.xlu0 %346
      %348 = vrot.lane.b32.xlu0 %v246, 91
      %v349 = vpop.permute.xlu0 %348
      %vm350 = vcmask 744448
      %v351 = vsel %vm350, %v343, %v345
      %v352 = vsel %vm350, %v345, %v347
      %v353 = vsel %vm350, %v347, %v349
      %357 = vrot.lane.b32.xlu0 %v243, 90
      %v358 = vpop.permute.xlu0 %357
      %359 = vrot.lane.b32.xlu0 %v244, 90
      %v360 = vpop.permute.xlu0 %359
      %361 = vrot.lane.b32.xlu0 %v245, 90
      %v362 = vpop.permute.xlu0 %361
      %363 = vrot.lane.b32.xlu0 %v246, 90
      %v364 = vpop.permute.xlu0 %363
      %vm365 = vcmask 736256
      %v366 = vsel %vm365, %v358, %v360
      %v367 = vsel %vm365, %v360, %v362
      %v368 = vsel %vm365, %v362, %v364
      %v374 = vunpack.c.l.s4 1983009808
      %v375 = vunpack.c.0.s8 %v374
      %v376 = vlaneseq
      %v377 = vshrl.u32 %v376, 7
      %v378 = vsub.s32 %v375, %v377
      %v379 = vrot.slane %v247, %v378
      %v380 = vcombine.high %v379, %v379
      %vm382 = vcmask 130048
      %v384 = vsel %vm382, %v380, 0
      %386 = vmatprep.subr.bf16.mxu0 %v352
      %387 = vmatpush1.bf16.msra.mxu0 %v351
      %388 = vmatprep.subr.bf16.mxu0 %v337
      %389 = vmatpush1.bf16.msra.mxu0 %v336
      %390 = vmatprep.subr.bf16.mxu0 %v322
      %391 = vmatpush1.bf16.msra.mxu0 %v321
      %392 = vmatprep.subr.bf16.mxu0 %v307
      %393 = vmatpush1.bf16.msra.mxu0 %v306
      %394 = vmatprep.subr.bf16.mxu0 %v292
      %395 = vmatpush1.bf16.msra.mxu0 %v291
      %396 = vmatprep.subr.bf16.mxu0 %v277
      %397 = vmatpush1.bf16.msra.mxu0 %v276
      %398 = vmatprep.subr.bf16.mxu0 %v262
      %399 = vmatpush1.bf16.msra.mxu0 %v261
      %400 = vmatprep.subr.bf16.mxu0 %v244
      %401 = vmatpush1.bf16.msra.mxu0 %v243
      %402 = vmatprep.subr.bf16.mxu0 0
      %403 = vmatpush2.bf16.msra.mxu0 0
      %404 = vmatprep.subr.bf16.mxu0 0
      %405 = vmatpush2.bf16.msra.mxu0 0
      %406 = vmatprep.subr.bf16.mxu0 0
      %407 = vmatpush2.bf16.msra.mxu0 0
      %408 = vmatprep.subr.bf16.mxu0 0
      %409 = vmatpush2.bf16.msra.mxu0 0
      %410 = vmatprep.subr.bf16.mxu0 0
      %411 = vmatpush2.bf16.msra.mxu0 0
      %412 = vmatprep.subr.bf16.mxu0 0
      %413 = vmatpush2.bf16.msra.mxu0 0
      %414 = vmatprep.subr.bf16.mxu0 0
      %415 = vmatpush2.bf16.msra.mxu0 0
      %416 = vmatprep.subr.bf16.mxu0 %v367
      %417 = vmatpush2.bf16.msra.mxu0 %v366
      %418 = vmatprep.mubr.bf16.mxu0 %v384
      %419 = vmatmul.mubr.bf16.gmra.mxu0 %v379
      %v420 = vpop.f32.mrf.mxu0
      %v421 = vadd.f32 0.0, %v420
      %v422 = vpop.f32.mrf.mxu0
      %v423 = vadd.f32 0.0, %v422
      %v424 = vpop.f32.mrf.mxu0
      %v425 = vpop.f32.mrf.mxu0
      %426 = vdwg.mxu0
      %427 = vmatprep.subr.bf16.mxu0 0
      %428 = vmatpush1.bf16.msra.mxu0 %v353
      %429 = vmatprep.subr.bf16.mxu0 0
      %430 = vmatpush1.bf16.msra.mxu0 %v338
      %431 = vmatprep.subr.bf16.mxu0 0
      %432 = vmatpush1.bf16.msra.mxu0 %v323
      %433 = vmatprep.subr.bf16.mxu0 0
      %434 = vmatpush1.bf16.msra.mxu0 %v308
      %435 = vmatprep.subr.bf16.mxu0 0
      %436 = vmatpush1.bf16.msra.mxu0 %v293
      %437 = vmatprep.subr.bf16.mxu0 0
      %438 = vmatpush1.bf16.msra.mxu0 %v278
      %439 = vmatprep.subr.bf16.mxu0 0
      %440 = vmatpush1.bf16.msra.mxu0 %v263
      %441 = vmatprep.subr.bf16.mxu0 0
      %442 = vmatpush1.bf16.msra.mxu0 %v245
      %443 = vmatprep.subr.bf16.mxu0 0
      %444 = vmatpush2.bf16.msra.mxu0 0
      %445 = vmatprep.subr.bf16.mxu0 0
      %446 = vmatpush2.bf16.msra.mxu0 0
      %447 = vmatprep.subr.bf16.mxu0 0
      %448 = vmatpush2.bf16.msra.mxu0 0
      %449 = vmatprep.subr.bf16.mxu0 0
      %450 = vmatpush2.bf16.msra.mxu0 0
      %451 = vmatprep.subr.bf16.mxu0 0
      %452 = vmatpush2.bf16.msra.mxu0 0
      %453 = vmatprep.subr.bf16.mxu0 0
      %454 = vmatpush2.bf16.msra.mxu0 0
      %455 = vmatprep.subr.bf16.mxu0 0
      %456 = vmatpush2.bf16.msra.mxu0 0
      %457 = vmatprep.subr.bf16.mxu0 0
      %458 = vmatpush2.bf16.msra.mxu0 %v368
      %459 = vmatprep.mubr.bf16.mxu0 %v384
      %460 = vmatmul.mubr.bf16.gmra.mxu0 %v379
      %v461 = vpop.f32.mrf.mxu0
      %v462 = vadd.f32 0.0, %v461
      %v463 = vpop.f32.mrf.mxu0
      %v464 = vpop.f32.mrf.mxu0
      %v465 = vpop.f32.mrf.mxu0
      %466 = vdwg.mxu0
      %v467 = vsel %vm240, 1, 0
      %v468 = vsel %vm241, 1, 0
      %v469 = vsel %vm242, 1, 0
      %vm470 = vcmp.eq.s32.totalorder %v467, 1
      %vm471 = vcmp.eq.s32.totalorder %v468, 1
      %vm472 = vcmp.eq.s32.totalorder %v469, 1
      %v473 = vsel %vm470, %v421, 0.0
      %v474 = vsel %vm471, %v423, 0.0
      %v475 = vsel %vm472, %v462, 0.0
      %vm476 = vcmask 1043456
      %v477 = vsel %vm476, %v473, 0.0
      %v478 = vsel %vm476, %v474, 0.0
      %v479 = vadd.f32 %v477, %v478
      %v480 = vsel %vm476, %v475, 0.0
      %v481 = vadd.f32 %v479, %v480
      %482 = vadd.xlane.f32.xlu0 %v481
      %v483 = vpop.xlane.xlu0 %482
      %v484 = vmul.f32 %v473, %v473
      %v485 = vmul.f32 %v474, %v474
      %v486 = vmul.f32 %v475, %v475
      %v487 = vsel %vm476, %v484, 0.0
      %v488 = vsel %vm476, %v485, 0.0
      %v489 = vadd.f32 %v487, %v488
      %v490 = vsel %vm476, %v486, 0.0
      %v491 = vadd.f32 %v489, %v490
      %492 = vadd.xlane.f32.xlu0 %v491
      %v493 = vpop.xlane.xlu0 %492
      %v494 = vmul.f32 %v483, 0.00390625
      %v495 = vmul.f32 %v493, 0.00390625
      %v496 = vmul.f32 %v494, %v494
      %v497 = vsub.f32 %v495, %v496
      %v498 = vmax.f32 %v497, 0.0
      %v499 = vsub.f32 %v421, %v494
      %v500 = vsub.f32 %v423, %v494
      %v501 = vsub.f32 %v462, %v494
      %v502 = vadd.f32 %v498, 1e-05
      %v503 = vrsqrt.pop %v502
      %v504 = vmul.f32 %v499, %v503
      %v505 = vmul.f32 %v500, %v503
      %v506 = vmul.f32 %v501, %v503
      %v507 = vmax.f32 %v504, 0.0
      %v508 = vmax.f32 %v505, 0.0
      %v509 = vmax.f32 %v506, 0.0
      %510 = vst [vmem:[#allocation2] sm:$0xcc] 0
      %511 = vst [vmem:[#allocation2 + $0x8] sm:$0xcc] 0
      %512 = vst [vmem:[#allocation2 + $0x10] sm:$0xc] 0
      %513 = vst [vmem:[#allocation2 + $0x14] sm:$0xff] 0
      %514 = vst [vmem:[#allocation2 + $0x1c] sm:$0xff] 0
      %515 = vst [vmem:[#allocation2 + $0x24] sm:$0xf] 0
      %v516 = vpack.c.bf16 %v507, %v507
      %v517 = vpack.c.bf16 %v508, %v508
      %v518 = vpack.c.bf16 %v509, %v509
      %v522 = vunpack.c.l.b16 %v516
      %v523 = vunpack.c.l.b16 %v517
      %v524 = vunpack.c.l.b16 %v518
      %v525 = vpack.c.b16 %v523, %v522
      %v526 = vpack.c.b16 %v524, %v524
      %527 = vrot.lane.b32.xlu0 %v525, 19
      %v528 = vpop.permute.xlu0 %527
      %529 = vrot.lane.b32.xlu0 %v526, 19
      %v530 = vpop.permute.xlu0 %529
      %v531 = vrot.slane %v528, 4
      %v532 = vrot.slane %v530, 4
      %vm533 = vcmask 154624
      %v534 = vsel %vm533, %v531, %v528
      %vm535 = vcmask 1043456
      %v536 = vsel %vm535, %v531, %v532
      %v537 = vsel %vm533, %v536, %v530
      %vm540 = vcmask 1041560
      %vm541 = vcmask 1045508
      %vm542 = vmor %vm541, %vm540
      %543 = vst.msk [vmem:[#allocation2 + $0x4] sm:$0x33] %vm542, %v534
      %vm544 = vcmask 1041408
      %vm545 = vcmask 152580
      %vm546 = vmor %vm545, %vm544
      %547 = vst.msk [vmem:[#allocation2 + $0xc] sm:$0x33] %vm546, %v537
      %v548 = vld [vmem:[#allocation2 + $0x4] sm:$0xf]
      %v549 = vld [vmem:[#allocation2 + $0x18] sm:$0xf]
      %552 = vrot.lane.b32.xlu0 %v548, 92
      %v553 = vpop.permute.xlu0 %552
      %554 = vrot.lane.b32.xlu0 %v549, 92
      %v555 = vpop.permute.xlu0 %554
      %vm558 = vcmask 142336
      %559 = vst.msk [vmem:[#allocation2 + $0x4] sm:$0xf] %vm558, %v553
      %560 = vst.msk [vmem:[#allocation2 + $0x18] sm:$0xf] %vm558, %v555
      %v561 = vld [vmem:[#allocation2 + $0xc] sm:$0xf]
      %v562 = vld [vmem:[#allocation2 + $0x20] sm:$0xf]
      %565 = vrot.lane.b32.xlu0 %v561, 36
      %v566 = vpop.permute.xlu0 %565
      %567 = vrot.lane.b32.xlu0 %v562, 36
      %v568 = vpop.permute.xlu0 %567
      %vm571 = vcmask 552336
      %572 = vst.msk [vmem:[#allocation2 + $0xc] sm:$0xf] %vm571, %v566
      %573 = vst.msk [vmem:[#allocation2 + $0x20] sm:$0xf] %vm571, %v568
      %v574 = vld [vmem:[#allocation2 + $0x4] sm:$0xff]
      %v575 = vld [vmem:[#allocation2 + $0xc] sm:$0xff]
      %v576 = vld [vmem:[#allocation2 + $0x18] sm:$0xff]
      %v577 = vld [vmem:[#allocation2 + $0x20] sm:$0xff]
      %v578 = vld [vmem:[#allocation2] sm:$0xff]
      %v579 = vld [vmem:[#allocation2 + $0x8] sm:$0xff]
      %v580 = vld [vmem:[#allocation2 + $0x10] sm:$0xf]
      %v581 = vld [vmem:[#allocation2 + $0x14] sm:$0xff]
      %v582 = vld [vmem:[#allocation2 + $0x1c] sm:$0xff]
      %v583 = vld [vmem:[#allocation2 + $0x24] sm:$0xf]
      %v584 = vadd.s32 %v183, 384
      %vm585 = vcmp.lt.s32.totalorder %v584, 0
      %v586 = vsub.s32 0, %v584
      %v587 = vsel %vm585, %v586, %v584
      %v588 = vmul.u32.u64.compose %v587, 3817748708
      %v589 = vextract.low.u32 %v588
      %v590 = vextract.high.u32 %v588
      %v591 = vshrl.u32 %v590, 4
      %v592 = vmul.u32 %v591, 18
      %v593 = vsub.s32 %v587, %v592
      %v594 = vsub.s32 0, %v593
      %v595 = vsel %vm585, %v594, %v593
      %vm596 = vcmp.ne.s32.totalorder %v595, 0
      %vm597 = vcmp.lt.s32.totalorder %v595, 0
      %vm598 = vmand %vm597, %vm596
      %v599 = vadd.s32 %v595, 18
      %v600 = vsel %vm598, %v599, %v595
      %vm601 = vcmp.eq.s32.totalorder %v231, 0
      %vm602 = vcmp.eq.s32.totalorder %v232, 0
      %vm603 = vcmp.eq.s32.totalorder %v233, 0
      %vm604 = vcmp.eq.s32.totalorder %v600, 0
      %v605 = vsel %vm601, 1, 0
      %v606 = vsel %vm602, 1, 0
      %v607 = vsel %vm603, 1, 0
      %v608 = vsel %vm604, 1, 0
      %vm609 = vcmp.eq.s32.totalorder %v605, 1
      %vm610 = vcmp.eq.s32.totalorder %v606, 1
      %vm611 = vcmp.eq.s32.totalorder %v607, 1
      %vm612 = vcmp.eq.s32.totalorder %v608, 1
      %vm613 = vmpackc.low %vm610, %vm609
      %vm614 = vmpackc.low %vm612, %vm611
      %v615 = vsel %vm613, 65537, 0
      %v616 = vsel %vm614, 65537, 0
      %617 = vrot.lane.b32.xlu0 %v615, 2
      %v618 = vpop.permute.xlu0 %617
      %619 = vrot.lane.b32.xlu0 %v616, 2
      %v620 = vpop.permute.xlu0 %619
      %v621 = vrot.slane %v618, 4
      %v622 = vrot.slane %v620, 4
      %vm623 = vcmask 15360
      %v624 = vsel %vm623, %v621, %v618
      %v625 = vsel %vm535, %v621, %v622
      %v626 = vsel %vm623, %v625, %v620
      %vm627 = vcmp.ne.s16.totalorder %v624, 0
      %vm628 = vcmp.ne.s16.totalorder %v626, 0
      %633 = vrot.lane.b32.xlu0 %v574, 2
      %v634 = vpop.permute.xlu0 %633
      %635 = vrot.lane.b32.xlu0 %v575, 2
      %v636 = vpop.permute.xlu0 %635
      %637 = vrot.lane.b32.xlu0 %v576, 2
      %v638 = vpop.permute.xlu0 %637
      %639 = vrot.lane.b32.xlu0 %v577, 2
      %v640 = vpop.permute.xlu0 %639
      %v641 = vrot.slane %v634, 4
      %v642 = vrot.slane %v636, 4
      %v643 = vrot.slane %v638, 4
      %v644 = vrot.slane %v640, 4
      %v645 = vsel %vm623, %v641, %v634
      %v646 = vsel %vm535, %v641, %v642
      %v647 = vsel %vm623, %v646, %v636
      %v648 = vsel %vm623, %v643, %v638
      %v649 = vsel %vm535, %v643, %v644
      %v650 = vsel %vm623, %v649, %v640
      %v655 = vsel %vm627, %v574, %v645
      %v656 = vsel %vm628, %v575, %v647
      %v657 = vsel %vm627, %v576, %v648
      %v658 = vsel %vm628, %v577, %v650
      %vm659 = vcmp.eq.s32.totalorder %v231, 17
      %vm660 = vcmp.eq.s32.totalorder %v232, 17
      %vm661 = vcmp.eq.s32.totalorder %v233, 17
      %vm662 = vcmp.eq.s32.totalorder %v600, 17
      %v663 = vsel %vm659, 1, 0
      %v664 = vsel %vm660, 1, 0
      %v665 = vsel %vm661, 1, 0
      %v666 = vsel %vm662, 1, 0
      %vm667 = vcmp.eq.s32.totalorder %v663, 1
      %vm668 = vcmp.eq.s32.totalorder %v664, 1
      %vm669 = vcmp.eq.s32.totalorder %v665, 1
      %vm670 = vcmp.eq.s32.totalorder %v666, 1
      %vm671 = vmpackc.low %vm668, %vm667
      %vm672 = vmpackc.low %vm670, %vm669
      %v673 = vsel %vm671, 65537, 0
      %v674 = vsel %vm672, 65537, 0
      %675 = vrot.lane.b32.xlu0 %v673, 126
      %v676 = vpop.permute.xlu0 %675
      %677 = vrot.lane.b32.xlu0 %v674, 126
      %v678 = vpop.permute.xlu0 %677
      %v679 = vrot.slane %v676, 4
      %v680 = vrot.slane %v678, 4
      %v681 = vsel %vm275, %v679, %v676
      %v682 = vsel %vm535, %v679, %v680
      %v683 = vsel %vm275, %v682, %v678
      %vm684 = vcmp.ne.s16.totalorder %v681, 0
      %vm685 = vcmp.ne.s16.totalorder %v683, 0
      %vm686 = vcmp.ne.s16.totalorder %v680, 0
      %691 = vrot.lane.b32.xlu0 %v655, 124
      %v692 = vpop.permute.xlu0 %691
      %693 = vrot.lane.b32.xlu0 %v656, 124
      %v694 = vpop.permute.xlu0 %693
      %695 = vrot.lane.b32.xlu0 %v657, 124
      %v696 = vpop.permute.xlu0 %695
      %697 = vrot.lane.b32.xlu0 %v658, 124
      %v698 = vpop.permute.xlu0 %697
      %v699 = vrot.slane %v692, 4
      %v700 = vrot.slane %v694, 4
      %v701 = vrot.slane %v696, 4
      %v702 = vrot.slane %v698, 4
      %vm703 = vcmask 1014784
      %v704 = vsel %vm703, %v699, %v692
      %v705 = vsel %vm535, %v699, %v700
      %v706 = vsel %vm703, %v705, %v694
      %v707 = vsel %vm703, %v701, %v696
      %v708 = vsel %vm535, %v701, %v702
      %v709 = vsel %vm703, %v708, %v698
      %v716 = vsel %vm684, %v578, %v704
      %v717 = vsel %vm685, %v579, %v706
      %v718 = vsel %vm686, %v580, %v700
      %v719 = vsel %vm684, %v581, %v707
      %v720 = vsel %vm685, %v582, %v709
      %v721 = vsel %vm686, %v583, %v702
      %v722 = vld [vmem:[%s2] sm:$0xf]
      %v727 = vrot.slane %v716, 4
      %v728 = vrot.slane %v717, 4
      %v729 = vrot.slane %v719, 4
      %v730 = vrot.slane %v720, 4
      %v731 = vsel %vm535, %v727, %v728
      %v732 = vsel %vm535, %v729, %v730
      %735 = vrot.lane.b32.xlu0 %v716, 112
      %v736 = vpop.permute.xlu0 %735
      %737 = vrot.lane.b32.xlu0 %v717, 112
      %v738 = vpop.permute.xlu0 %737
      %739 = vrot.lane.b32.xlu0 %v718, 112
      %v740 = vpop.permute.xlu0 %739
      %741 = vrot.lane.b32.xlu0 %v719, 112
      %v742 = vpop.permute.xlu0 %741
      %743 = vrot.lane.b32.xlu0 %v720, 112
      %v744 = vpop.permute.xlu0 %743
      %745 = vrot.lane.b32.xlu0 %v721, 112
      %v746 = vpop.permute.xlu0 %745
      %v747 = vrot.slane %v736, 4
      %v748 = vrot.slane %v738, 4
      %v749 = vrot.slane %v742, 4
      %v750 = vrot.slane %v744, 4
      %v751 = vsel %vm535, %v747, %v748
      %vm752 = vcmask 916480
      %v753 = vsel %vm752, %v751, %v738
      %v754 = vsel %vm752, %v748, %v740
      %v755 = vsel %vm535, %v749, %v750
      %v756 = vsel %vm752, %v755, %v744
      %v757 = vsel %vm752, %v750, %v746
      %758 = vrot.lane.b32.xlu0 %v716, 111
      %v759 = vpop.permute.xlu0 %758
      %760 = vrot.lane.b32.xlu0 %v717, 111
      %v761 = vpop.permute.xlu0 %760
      %762 = vrot.lane.b32.xlu0 %v718, 111
      %v763 = vpop.permute.xlu0 %762
      %764 = vrot.lane.b32.xlu0 %v719, 111
      %v765 = vpop.permute.xlu0 %764
      %766 = vrot.lane.b32.xlu0 %v720, 111
      %v767 = vpop.permute.xlu0 %766
      %768 = vrot.lane.b32.xlu0 %v721, 111
      %v769 = vpop.permute.xlu0 %768
      %v770 = vrot.slane %v759, 4
      %v771 = vrot.slane %v761, 4
      %v772 = vrot.slane %v765, 4
      %v773 = vrot.slane %v767, 4
      %v774 = vsel %vm535, %v770, %v771
      %vm775 = vcmask 908288
      %v776 = vsel %vm775, %v774, %v761
      %v777 = vsel %vm775, %v771, %v763
      %v778 = vsel %vm535, %v772, %v773
      %v779 = vsel %vm775, %v778, %v767
      %v780 = vsel %vm775, %v773, %v769
      %781 = vrot.lane.b32.xlu0 %v716, 110
      %v782 = vpop.permute.xlu0 %781
      %783 = vrot.lane.b32.xlu0 %v717, 110
      %v784 = vpop.permute.xlu0 %783
      %785 = vrot.lane.b32.xlu0 %v718, 110
      %v786 = vpop.permute.xlu0 %785
      %787 = vrot.lane.b32.xlu0 %v719, 110
      %v788 = vpop.permute.xlu0 %787
      %789 = vrot.lane.b32.xlu0 %v720, 110
      %v790 = vpop.permute.xlu0 %789
      %791 = vrot.lane.b32.xlu0 %v721, 110
      %v792 = vpop.permute.xlu0 %791
      %v793 = vrot.slane %v782, 4
      %v794 = vrot.slane %v784, 4
      %v795 = vrot.slane %v788, 4
      %v796 = vrot.slane %v790, 4
      %v797 = vsel %vm535, %v793, %v794
      %v798 = vsel %vm290, %v797, %v784
      %v799 = vsel %vm290, %v794, %v786
      %v800 = vsel %vm535, %v795, %v796
      %v801 = vsel %vm290, %v800, %v790
      %v802 = vsel %vm290, %v796, %v792
      %803 = vrot.lane.b32.xlu0 %v716, 94
      %v804 = vpop.permute.xlu0 %803
      %805 = vrot.lane.b32.xlu0 %v717, 94
      %v806 = vpop.permute.xlu0 %805
      %807 = vrot.lane.b32.xlu0 %v718, 94
      %v808 = vpop.permute.xlu0 %807
      %809 = vrot.lane.b32.xlu0 %v719, 94
      %v810 = vpop.permute.xlu0 %809
      %811 = vrot.lane.b32.xlu0 %v720, 94
      %v812 = vpop.permute.xlu0 %811
      %813 = vrot.lane.b32.xlu0 %v721, 94
      %v814 = vpop.permute.xlu0 %813
      %v815 = vrot.slane %v804, 4
      %v816 = vrot.slane %v806, 4
      %v817 = vrot.slane %v810, 4
      %v818 = vrot.slane %v812, 4
      %v819 = vsel %vm535, %v815, %v816
      %vm820 = vcmask 769024
      %v821 = vsel %vm820, %v819, %v806
      %v822 = vsel %vm820, %v816, %v808
      %v823 = vsel %vm535, %v817, %v818
      %v824 = vsel %vm820, %v823, %v812
      %v825 = vsel %vm820, %v818, %v814
      %826 = vrot.lane.b32.xlu0 %v716, 93
      %v827 = vpop.permute.xlu0 %826
      %828 = vrot.lane.b32.xlu0 %v717, 93
      %v829 = vpop.permute.xlu0 %828
      %830 = vrot.lane.b32.xlu0 %v718, 93
      %v831 = vpop.permute.xlu0 %830
      %832 = vrot.lane.b32.xlu0 %v719, 93
      %v833 = vpop.permute.xlu0 %832
      %834 = vrot.lane.b32.xlu0 %v720, 93
      %v835 = vpop.permute.xlu0 %834
      %836 = vrot.lane.b32.xlu0 %v721, 93
      %v837 = vpop.permute.xlu0 %836
      %v838 = vrot.slane %v827, 4
      %v839 = vrot.slane %v829, 4
      %v840 = vrot.slane %v833, 4
      %v841 = vrot.slane %v835, 4
      %v842 = vsel %vm535, %v838, %v839
      %vm843 = vcmask 760832
      %v844 = vsel %vm843, %v842, %v829
      %v845 = vsel %vm843, %v839, %v831
      %v846 = vsel %vm535, %v840, %v841
      %v847 = vsel %vm843, %v846, %v835
      %v848 = vsel %vm843, %v841, %v837
      %849 = vrot.lane.b32.xlu0 %v716, 92
      %v850 = vpop.permute.xlu0 %849
      %851 = vrot.lane.b32.xlu0 %v717, 92
      %v852 = vpop.permute.xlu0 %851
      %853 = vrot.lane.b32.xlu0 %v718, 92
      %v854 = vpop.permute.xlu0 %853
      %855 = vrot.lane.b32.xlu0 %v719, 92
      %v856 = vpop.permute.xlu0 %855
      %857 = vrot.lane.b32.xlu0 %v720, 92
      %v858 = vpop.permute.xlu0 %857
      %859 = vrot.lane.b32.xlu0 %v721, 92
      %v860 = vpop.permute.xlu0 %859
      %v861 = vrot.slane %v850, 4
      %v862 = vrot.slane %v852, 4
      %v863 = vrot.slane %v856, 4
      %v864 = vrot.slane %v858, 4
      %v865 = vsel %vm535, %v861, %v862
      %v866 = vsel %vm335, %v865, %v852
      %v867 = vsel %vm335, %v862, %v854
      %v868 = vsel %vm535, %v863, %v864
      %v869 = vsel %vm335, %v868, %v858
      %v870 = vsel %vm335, %v864, %v860
      %871 = vrot.lane.b32.xlu0 %v716, 127
      %v872 = vpop.permute.xlu0 %871
      %873 = vrot.lane.b32.xlu0 %v717, 127
      %v874 = vpop.permute.xlu0 %873
      %875 = vrot.lane.b32.xlu0 %v719, 127
      %v876 = vpop.permute.xlu0 %875
      %877 = vrot.lane.b32.xlu0 %v720, 127
      %v878 = vpop.permute.xlu0 %877
      %v879 = vrot.slane %v872, 4
      %v880 = vrot.slane %v874, 4
      %v881 = vrot.slane %v876, 4
      %v882 = vrot.slane %v878, 4
      %v883 = vsel %vm535, %v879, %v880
      %v884 = vsel %vm260, %v872, %v883
      %v885 = vsel %vm260, %v874, %v880
      %v886 = vsel %vm535, %v881, %v882
      %v887 = vsel %vm260, %v876, %v886
      %v888 = vsel %vm260, %v878, %v882
      %889 = vrot.lane.b32.xlu0 %v731, 126
      %v890 = vpop.permute.xlu0 %889
      %891 = vrot.lane.b32.xlu0 %v728, 126
      %v892 = vpop.permute.xlu0 %891
      %893 = vrot.lane.b32.xlu0 %v732, 126
      %v894 = vpop.permute.xlu0 %893
      %895 = vrot.lane.b32.xlu0 %v730, 126
      %v896 = vpop.permute.xlu0 %895
      %v897 = vrot.slane %v890, 4
      %v898 = vrot.slane %v892, 4
      %v899 = vrot.slane %v894, 4
      %v900 = vrot.slane %v896, 4
      %v901 = vsel %vm275, %v897, %v890
      %v902 = vsel %vm535, %v897, %v898
      %v903 = vsel %vm275, %v902, %v892
      %v904 = vsel %vm275, %v899, %v894
      %v905 = vsel %vm535, %v899, %v900
      %v906 = vsel %vm275, %v905, %v896
      %907 = vrot.lane.b32.xlu0 %v753, 126
      %v908 = vpop.permute.xlu0 %907
      %909 = vrot.lane.b32.xlu0 %v754, 126
      %v910 = vpop.permute.xlu0 %909
      %911 = vrot.lane.b32.xlu0 %v756, 126
      %v912 = vpop.permute.xlu0 %911
      %913 = vrot.lane.b32.xlu0 %v757, 126
      %v914 = vpop.permute.xlu0 %913
      %v915 = vrot.slane %v908, 4
      %v916 = vrot.slane %v910, 4
      %v917 = vrot.slane %v912, 4
      %v918 = vrot.slane %v914, 4
      %v919 = vsel %vm275, %v915, %v908
      %v920 = vsel %vm535, %v915, %v916
      %v921 = vsel %vm275, %v920, %v910
      %v922 = vsel %vm275, %v917, %v912
      %v923 = vsel %vm535, %v917, %v918
      %v924 = vsel %vm275, %v923, %v914
      %925 = vrot.lane.b32.xlu0 %v776, 126
      %v926 = vpop.permute.xlu0 %925
      %927 = vrot.lane.b32.xlu0 %v777, 126
      %v928 = vpop.permute.xlu0 %927
      %929 = vrot.lane.b32.xlu0 %v779, 126
      %v930 = vpop.permute.xlu0 %929
      %931 = vrot.lane.b32.xlu0 %v780, 126
      %v932 = vpop.permute.xlu0 %931
      %v933 = vrot.slane %v926, 4
      %v934 = vrot.slane %v928, 4
      %v935 = vrot.slane %v930, 4
      %v936 = vrot.slane %v932, 4
      %v937 = vsel %vm275, %v933, %v926
      %v938 = vsel %vm535, %v933, %v934
      %v939 = vsel %vm275, %v938, %v928
      %v940 = vsel %vm275, %v935, %v930
      %v941 = vsel %vm535, %v935, %v936
      %v942 = vsel %vm275, %v941, %v932
      %943 = vrot.lane.b32.xlu0 %v798, 126
      %v944 = vpop.permute.xlu0 %943
      %945 = vrot.lane.b32.xlu0 %v799, 126
      %v946 = vpop.permute.xlu0 %945
      %947 = vrot.lane.b32.xlu0 %v801, 126
      %v948 = vpop.permute.xlu0 %947
      %949 = vrot.lane.b32.xlu0 %v802, 126
      %v950 = vpop.permute.xlu0 %949
      %v951 = vrot.slane %v944, 4
      %v952 = vrot.slane %v946, 4
      %v953 = vrot.slane %v948, 4
      %v954 = vrot.slane %v950, 4
      %v955 = vsel %vm275, %v951, %v944
      %v956 = vsel %vm535, %v951, %v952
      %v957 = vsel %vm275, %v956, %v946
      %v958 = vsel %vm275, %v953, %v948
      %v959 = vsel %vm535, %v953, %v954
      %v960 = vsel %vm275, %v959, %v950
      %961 = vrot.lane.b32.xlu0 %v821, 126
      %v962 = vpop.permute.xlu0 %961
      %963 = vrot.lane.b32.xlu0 %v822, 126
      %v964 = vpop.permute.xlu0 %963
      %965 = vrot.lane.b32.xlu0 %v824, 126
      %v966 = vpop.permute.xlu0 %965
      %967 = vrot.lane.b32.xlu0 %v825, 126
      %v968 = vpop.permute.xlu0 %967
      %v969 = vrot.slane %v962, 4
      %v970 = vrot.slane %v964, 4
      %v971 = vrot.slane %v966, 4
      %v972 = vrot.slane %v968, 4
      %v973 = vsel %vm275, %v969, %v962
      %v974 = vsel %vm535, %v969, %v970
      %v975 = vsel %vm275, %v974, %v964
      %v976 = vsel %vm275, %v971, %v966
      %v977 = vsel %vm535, %v971, %v972
      %v978 = vsel %vm275, %v977, %v968
      %979 = vrot.lane.b32.xlu0 %v844, 126
      %v980 = vpop.permute.xlu0 %979
      %981 = vrot.lane.b32.xlu0 %v845, 126
      %v982 = vpop.permute.xlu0 %981
      %983 = vrot.lane.b32.xlu0 %v847, 126
      %v984 = vpop.permute.xlu0 %983
      %985 = vrot.lane.b32.xlu0 %v848, 126
      %v986 = vpop.permute.xlu0 %985
      %v987 = vrot.slane %v980, 4
      %v988 = vrot.slane %v982, 4
      %v989 = vrot.slane %v984, 4
      %v990 = vrot.slane %v986, 4
      %v991 = vsel %vm275, %v987, %v980
      %v992 = vsel %vm535, %v987, %v988
      %v993 = vsel %vm275, %v992, %v982
      %v994 = vsel %vm275, %v989, %v984
      %v995 = vsel %vm535, %v989, %v990
      %v996 = vsel %vm275, %v995, %v986
      %997 = vrot.lane.b32.xlu0 %v866, 126
      %v998 = vpop.permute.xlu0 %997
      %999 = vrot.lane.b32.xlu0 %v867, 126
      %v1000 = vpop.permute.xlu0 %999
      %1001 = vrot.lane.b32.xlu0 %v869, 126
      %v1002 = vpop.permute.xlu0 %1001
      %1003 = vrot.lane.b32.xlu0 %v870, 126
      %v1004 = vpop.permute.xlu0 %1003
      %v1005 = vrot.slane %v998, 4
      %v1006 = vrot.slane %v1000, 4
      %v1007 = vrot.slane %v1002, 4
      %v1008 = vrot.slane %v1004, 4
      %v1009 = vsel %vm275, %v1005, %v998
      %v1010 = vsel %vm535, %v1005, %v1006
      %v1011 = vsel %vm275, %v1010, %v1000
      %v1012 = vsel %vm275, %v1007, %v1002
      %v1013 = vsel %vm535, %v1007, %v1008
      %v1014 = vsel %vm275, %v1013, %v1004
      %v1017 = vunpack.c.l.s4 1983009808
      %v1018 = vunpack.c.0.s8 %v1017
      %v1019 = vlaneseq
      %v1020 = vshrl.u32 %v1019, 7
      %v1021 = vsub.s32 %v1018, %v1020
      %v1022 = vrot.slane %v722, %v1021
      %v1023 = vcombine.high %v1022, %v1022
      %v1025 = vunpack.c.l.b16 %v716
      %v1026 = vunpack.c.h.b16 %v716
      %v1027 = vunpack.c.l.b16 %v717
      %v1028 = vunpack.c.h.b16 %v717
      %v1029 = vunpack.c.l.b16 %v719
      %v1030 = vunpack.c.h.b16 %v719
      %v1031 = vunpack.c.l.b16 %v720
      %v1032 = vunpack.c.h.b16 %v720
      %v1033 = vunpack.c.l.b16 %v884
      %v1034 = vunpack.c.h.b16 %v884
      %v1035 = vunpack.c.l.b16 %v885
      %v1036 = vunpack.c.h.b16 %v885
      %v1037 = vunpack.c.l.b16 %v887
      %v1038 = vunpack.c.h.b16 %v887
      %v1039 = vunpack.c.l.b16 %v888
      %v1040 = vunpack.c.h.b16 %v888
      %v1041 = vunpack.c.l.b16 %v901
      %v1042 = vunpack.c.h.b16 %v901
      %v1043 = vunpack.c.l.b16 %v903
      %v1044 = vunpack.c.h.b16 %v903
      %v1045 = vunpack.c.l.b16 %v904
      %v1046 = vunpack.c.h.b16 %v904
      %v1047 = vunpack.c.l.b16 %v906
      %v1048 = vunpack.c.h.b16 %v906
      %v1049 = vunpack.c.l.b16 %v919
      %v1050 = vunpack.c.h.b16 %v919
      %v1051 = vunpack.c.l.b16 %v921
      %v1052 = vunpack.c.h.b16 %v921
      %v1053 = vunpack.c.l.b16 %v922
      %v1054 = vunpack.c.h.b16 %v922
      %v1055 = vunpack.c.l.b16 %v924
      %v1056 = vunpack.c.h.b16 %v924
      %v1057 = vunpack.c.l.b16 %v937
      %v1058 = vunpack.c.h.b16 %v937
      %v1059 = vunpack.c.l.b16 %v939
      %v1060 = vunpack.c.h.b16 %v939
      %v1061 = vunpack.c.l.b16 %v940
      %v1062 = vunpack.c.h.b16 %v940
      %v1063 = vunpack.c.l.b16 %v942
      %v1064 = vunpack.c.h.b16 %v942
      %v1065 = vunpack.c.l.b16 %v955
      %v1066 = vunpack.c.h.b16 %v955
      %v1067 = vunpack.c.l.b16 %v957
      %v1068 = vunpack.c.h.b16 %v957
      %v1069 = vunpack.c.l.b16 %v958
      %v1070 = vunpack.c.h.b16 %v958
      %v1071 = vunpack.c.l.b16 %v960
      %v1072 = vunpack.c.h.b16 %v960
      %v1073 = vunpack.c.l.b16 %v973
      %v1074 = vunpack.c.h.b16 %v973
      %v1075 = vunpack.c.l.b16 %v975
      %v1076 = vunpack.c.h.b16 %v975
      %v1077 = vunpack.c.l.b16 %v976
      %v1078 = vunpack.c.h.b16 %v976
      %v1079 = vunpack.c.l.b16 %v978
      %v1080 = vunpack.c.h.b16 %v978
      %v1081 = vunpack.c.l.b16 %v991
      %v1082 = vunpack.c.h.b16 %v991
      %v1083 = vunpack.c.l.b16 %v993
      %v1084 = vunpack.c.h.b16 %v993
      %v1085 = vunpack.c.l.b16 %v994
      %v1086 = vunpack.c.h.b16 %v994
      %v1087 = vunpack.c.l.b16 %v996
      %v1088 = vunpack.c.h.b16 %v996
      %v1089 = vunpack.c.l.b16 %v1009
      %v1090 = vunpack.c.h.b16 %v1009
      %v1091 = vunpack.c.l.b16 %v1011
      %v1092 = vunpack.c.h.b16 %v1011
      %v1093 = vunpack.c.l.b16 %v1012
      %v1094 = vunpack.c.h.b16 %v1012
      %v1095 = vunpack.c.l.b16 %v1014
      %v1096 = vunpack.c.h.b16 %v1014
      %v1097 = vpack.c.b16 %v1029, %v1025
      %v1098 = vpack.c.b16 %v1030, %v1026
      %v1099 = vpack.c.b16 %v1031, %v1027
      %v1100 = vpack.c.b16 %v1032, %v1028
      %v1101 = vpack.c.b16 %v1037, %v1033
      %v1102 = vpack.c.b16 %v1038, %v1034
      %v1103 = vpack.c.b16 %v1039, %v1035
      %v1104 = vpack.c.b16 %v1040, %v1036
      %v1105 = vpack.c.b16 %v1045, %v1041
      %v1106 = vpack.c.b16 %v1046, %v1042
      %v1107 = vpack.c.b16 %v1047, %v1043
      %v1108 = vpack.c.b16 %v1048, %v1044
      %v1109 = vpack.c.b16 %v1053, %v1049
      %v1110 = vpack.c.b16 %v1054, %v1050
      %v1111 = vpack.c.b16 %v1055, %v1051
      %v1112 = vpack.c.b16 %v1056, %v1052
      %v1113 = vpack.c.b16 %v1061, %v1057
      %v1114 = vpack.c.b16 %v1062, %v1058
      %v1115 = vpack.c.b16 %v1063, %v1059
      %v1116 = vpack.c.b16 %v1064, %v1060
      %v1117 = vpack.c.b16 %v1069, %v1065
      %v1118 = vpack.c.b16 %v1070, %v1066
      %v1119 = vpack.c.b16 %v1071, %v1067
      %v1120 = vpack.c.b16 %v1072, %v1068
      %v1121 = vpack.c.b16 %v1077, %v1073
      %v1122 = vpack.c.b16 %v1078, %v1074
      %v1123 = vpack.c.b16 %v1079, %v1075
      %v1124 = vpack.c.b16 %v1080, %v1076
      %v1125 = vpack.c.b16 %v1085, %v1081
      %v1126 = vpack.c.b16 %v1086, %v1082
      %v1127 = vpack.c.b16 %v1087, %v1083
      %v1128 = vpack.c.b16 %v1088, %v1084
      %v1129 = vpack.c.b16 %v1093, %v1089
      %v1130 = vpack.c.b16 %v1094, %v1090
      %v1131 = vpack.c.b16 %v1095, %v1091
      %v1132 = vpack.c.b16 %v1096, %v1092
      %1133 = vrot.lane.b32.xlu0 %v1097, 2
      %v1134 = vpop.permute.xlu0 %1133
      %1135 = vrot.lane.b32.xlu0 %v1098, 2
      %v1136 = vpop.permute.xlu0 %1135
      %1137 = vrot.lane.b32.xlu0 %v1099, 2
      %v1138 = vpop.permute.xlu0 %1137
      %1139 = vrot.lane.b32.xlu0 %v1100, 2
      %v1140 = vpop.permute.xlu0 %1139
      %1141 = vrot.lane.b32.xlu0 %v1101, 2
      %v1142 = vpop.permute.xlu0 %1141
      %1143 = vrot.lane.b32.xlu0 %v1102, 2
      %v1144 = vpop.permute.xlu0 %1143
      %1145 = vrot.lane.b32.xlu0 %v1103, 2
      %v1146 = vpop.permute.xlu0 %1145
      %1147 = vrot.lane.b32.xlu0 %v1104, 2
      %v1148 = vpop.permute.xlu0 %1147
      %1149 = vrot.lane.b32.xlu0 %v1105, 2
      %v1150 = vpop.permute.xlu0 %1149
      %1151 = vrot.lane.b32.xlu0 %v1106, 2
      %v1152 = vpop.permute.xlu0 %1151
      %1153 = vrot.lane.b32.xlu0 %v1107, 2
      %v1154 = vpop.permute.xlu0 %1153
      %1155 = vrot.lane.b32.xlu0 %v1108, 2
      %v1156 = vpop.permute.xlu0 %1155
      %1157 = vrot.lane.b32.xlu0 %v1109, 2
      %v1158 = vpop.permute.xlu0 %1157
      %1159 = vrot.lane.b32.xlu0 %v1110, 2
      %v1160 = vpop.permute.xlu0 %1159
      %1161 = vrot.lane.b32.xlu0 %v1111, 2
      %v1162 = vpop.permute.xlu0 %1161
      %1163 = vrot.lane.b32.xlu0 %v1112, 2
      %v1164 = vpop.permute.xlu0 %1163
      %1165 = vrot.lane.b32.xlu0 %v1113, 2
      %v1166 = vpop.permute.xlu0 %1165
      %1167 = vrot.lane.b32.xlu0 %v1114, 2
      %v1168 = vpop.permute.xlu0 %1167
      %1169 = vrot.lane.b32.xlu0 %v1115, 2
      %v1170 = vpop.permute.xlu0 %1169
      %1171 = vrot.lane.b32.xlu0 %v1116, 2
      %v1172 = vpop.permute.xlu0 %1171
      %1173 = vrot.lane.b32.xlu0 %v1117, 2
      %v1174 = vpop.permute.xlu0 %1173
      %1175 = vrot.lane.b32.xlu0 %v1118, 2
      %v1176 = vpop.permute.xlu0 %1175
      %1177 = vrot.lane.b32.xlu0 %v1119, 2
      %v1178 = vpop.permute.xlu0 %1177
      %1179 = vrot.lane.b32.xlu0 %v1120, 2
      %v1180 = vpop.permute.xlu0 %1179
      %1181 = vrot.lane.b32.xlu0 %v1121, 2
      %v1182 = vpop.permute.xlu0 %1181
      %1183 = vrot.lane.b32.xlu0 %v1122, 2
      %v1184 = vpop.permute.xlu0 %1183
      %1185 = vrot.lane.b32.xlu0 %v1123, 2
      %v1186 = vpop.permute.xlu0 %1185
      %1187 = vrot.lane.b32.xlu0 %v1124, 2
      %v1188 = vpop.permute.xlu0 %1187
      %1189 = vrot.lane.b32.xlu0 %v1125, 2
      %v1190 = vpop.permute.xlu0 %1189
      %1191 = vrot.lane.b32.xlu0 %v1126, 2
      %v1192 = vpop.permute.xlu0 %1191
      %1193 = vrot.lane.b32.xlu0 %v1127, 2
      %v1194 = vpop.permute.xlu0 %1193
      %1195 = vrot.lane.b32.xlu0 %v1128, 2
      %v1196 = vpop.permute.xlu0 %1195
      %1197 = vrot.lane.b32.xlu0 %v1129, 2
      %v1198 = vpop.permute.xlu0 %1197
      %1199 = vrot.lane.b32.xlu0 %v1130, 2
      %v1200 = vpop.permute.xlu0 %1199
      %1201 = vrot.lane.b32.xlu0 %v1131, 2
      %v1202 = vpop.permute.xlu0 %1201
      %1203 = vrot.lane.b32.xlu0 %v1132, 2
      %v1204 = vpop.permute.xlu0 %1203
      %v1205 = vsel %vm623, %v1134, %v1136
      %v1206 = vsel %vm623, %v1136, %v1138
      %v1207 = vsel %vm623, %v1138, %v1140
      %v1208 = vsel %vm623, %v1142, %v1144
      %v1209 = vsel %vm623, %v1144, %v1146
      %v1210 = vsel %vm623, %v1146, %v1148
      %v1211 = vsel %vm623, %v1150, %v1152
      %v1212 = vsel %vm623, %v1152, %v1154
      %v1213 = vsel %vm623, %v1154, %v1156
      %v1214 = vsel %vm623, %v1158, %v1160
      %v1215 = vsel %vm623, %v1160, %v1162
      %v1216 = vsel %vm623, %v1162, %v1164
      %v1217 = vsel %vm623, %v1166, %v1168
      %v1218 = vsel %vm623, %v1168, %v1170
      %v1219 = vsel %vm623, %v1170, %v1172
      %v1220 = vsel %vm623, %v1174, %v1176
      %v1221 = vsel %vm623, %v1176, %v1178
      %v1222 = vsel %vm623, %v1178, %v1180
      %v1223 = vsel %vm623, %v1182, %v1184
      %v1224 = vsel %vm623, %v1184, %v1186
      %v1225 = vsel %vm623, %v1186, %v1188
      %v1226 = vsel %vm623, %v1190, %v1192
      %v1227 = vsel %vm623, %v1192, %v1194
      %v1228 = vsel %vm623, %v1194, %v1196
      %v1229 = vsel %vm623, %v1198, %v1200
      %v1230 = vsel %vm623, %v1200, %v1202
      %v1231 = vsel %vm623, %v1202, %v1204
      %v1260 = vsel %vm382, %v1023, 0
      %1262 = vmatprep.subr.bf16.mxu0 %v1227
      %1263 = vmatpush1.bf16.msra.mxu0 %v1226
      %1264 = vmatprep.subr.bf16.mxu0 %v1224
      %1265 = vmatpush1.bf16.msra.mxu0 %v1223
      %1266 = vmatprep.subr.bf16.mxu0 %v1221
      %1267 = vmatpush1.bf16.msra.mxu0 %v1220
      %1268 = vmatprep.subr.bf16.mxu0 %v1218
      %1269 = vmatpush1.bf16.msra.mxu0 %v1217
      %1270 = vmatprep.subr.bf16.mxu0 %v1215
      %1271 = vmatpush1.bf16.msra.mxu0 %v1214
      %1272 = vmatprep.subr.bf16.mxu0 %v1212
      %1273 = vmatpush1.bf16.msra.mxu0 %v1211
      %1274 = vmatprep.subr.bf16.mxu0 %v1209
      %1275 = vmatpush1.bf16.msra.mxu0 %v1208
      %1276 = vmatprep.subr.bf16.mxu0 %v1206
      %1277 = vmatpush1.bf16.msra.mxu0 %v1205
      %1278 = vmatprep.subr.bf16.mxu0 0
      %1279 = vmatpush2.bf16.msra.mxu0 0
      %1280 = vmatprep.subr.bf16.mxu0 0
      %1281 = vmatpush2.bf16.msra.mxu0 0
      %1282 = vmatprep.subr.bf16.mxu0 0
      %1283 = vmatpush2.bf16.msra.mxu0 0
      %1284 = vmatprep.subr.bf16.mxu0 0
      %1285 = vmatpush2.bf16.msra.mxu0 0
      %1286 = vmatprep.subr.bf16.mxu0 0
      %1287 = vmatpush2.bf16.msra.mxu0 0
      %1288 = vmatprep.subr.bf16.mxu0 0
      %1289 = vmatpush2.bf16.msra.mxu0 0
      %1290 = vmatprep.subr.bf16.mxu0 0
      %1291 = vmatpush2.bf16.msra.mxu0 0
      %1292 = vmatprep.subr.bf16.mxu0 %v1230
      %1293 = vmatpush2.bf16.msra.mxu0 %v1229
      %1294 = vmatprep.mubr.bf16.mxu0 %v1260
      %1295 = vmatmul.mubr.bf16.gmra.mxu0 %v1022
      %v1296 = vpop.f32.mrf.mxu0
      %v1297 = vadd.f32 0.0, %v1296
      %v1298 = vpop.f32.mrf.mxu0
      %v1299 = vadd.f32 0.0, %v1298
      %v1300 = vpop.f32.mrf.mxu0
      %v1301 = vpop.f32.mrf.mxu0
      %1302 = vdwg.mxu0
      %1303 = vmatprep.subr.bf16.mxu0 0
      %1304 = vmatpush1.bf16.msra.mxu0 %v1228
      %1305 = vmatprep.subr.bf16.mxu0 0
      %1306 = vmatpush1.bf16.msra.mxu0 %v1225
      %1307 = vmatprep.subr.bf16.mxu0 0
      %1308 = vmatpush1.bf16.msra.mxu0 %v1222
      %1309 = vmatprep.subr.bf16.mxu0 0
      %1310 = vmatpush1.bf16.msra.mxu0 %v1219
      %1311 = vmatprep.subr.bf16.mxu0 0
      %1312 = vmatpush1.bf16.msra.mxu0 %v1216
      %1313 = vmatprep.subr.bf16.mxu0 0
      %1314 = vmatpush1.bf16.msra.mxu0 %v1213
      %1315 = vmatprep.subr.bf16.mxu0 0
      %1316 = vmatpush1.bf16.msra.mxu0 %v1210
      %1317 = vmatprep.subr.bf16.mxu0 0
      %1318 = vmatpush1.bf16.msra.mxu0 %v1207
      %1319 = vmatprep.subr.bf16.mxu0 0
      %1320 = vmatpush2.bf16.msra.mxu0 0
      %1321 = vmatprep.subr.bf16.mxu0 0
      %1322 = vmatpush2.bf16.msra.mxu0 0
      %1323 = vmatprep.subr.bf16.mxu0 0
      %1324 = vmatpush2.bf16.msra.mxu0 0
      %1325 = vmatprep.subr.bf16.mxu0 0
      %1326 = vmatpush2.bf16.msra.mxu0 0
      %1327 = vmatprep.subr.bf16.mxu0 0
      %1328 = vmatpush2.bf16.msra.mxu0 0
      %1329 = vmatprep.subr.bf16.mxu0 0
      %1330 = vmatpush2.bf16.msra.mxu0 0
      %1331 = vmatprep.subr.bf16.mxu0 0
      %1332 = vmatpush2.bf16.msra.mxu0 0
      %1333 = vmatprep.subr.bf16.mxu0 0
      %1334 = vmatpush2.bf16.msra.mxu0 %v1231
      %1335 = vmatprep.mubr.bf16.mxu0 %v1260
      %1336 = vmatmul.mubr.bf16.gmra.mxu0 %v1022
      %v1337 = vpop.f32.mrf.mxu0
      %v1338 = vadd.f32 0.0, %v1337
      %v1339 = vpop.f32.mrf.mxu0
      %v1340 = vpop.f32.mrf.mxu0
      %v1341 = vpop.f32.mrf.mxu0
      %1342 = vdwg.mxu0
      %v1343 = vsel %vm470, %v1297, 0.0
      %v1344 = vsel %vm471, %v1299, 0.0
      %v1345 = vsel %vm472, %v1338, 0.0
      %v1346 = vsel %vm476, %v1343, 0.0
      %v1347 = vsel %vm476, %v1344, 0.0
      %v1348 = vadd.f32 %v1346, %v1347
      %v1349 = vsel %vm476, %v1345, 0.0
      %v1350 = vadd.f32 %v1348, %v1349
      %1351 = vadd.xlane.f32.xlu0 %v1350
      %v1352 = vpop.xlane.xlu0 %1351
      %v1353 = vmul.f32 %v1343, %v1343
      %v1354 = vmul.f32 %v1344, %v1344
      %v1355 = vmul.f32 %v1345, %v1345
      %v1356 = vsel %vm476, %v1353, 0.0
      %v1357 = vsel %vm476, %v1354, 0.0
      %v1358 = vadd.f32 %v1356, %v1357
      %v1359 = vsel %vm476, %v1355, 0.0
      %v1360 = vadd.f32 %v1358, %v1359
      %1361 = vadd.xlane.f32.xlu0 %v1360
      %v1362 = vpop.xlane.xlu0 %1361
      %v1363 = vmul.f32 %v1352, 0.00390625
      %v1364 = vmul.f32 %v1362, 0.00390625
      %v1365 = vmul.f32 %v1363, %v1363
      %v1366 = vsub.f32 %v1364, %v1365
      %v1367 = vmax.f32 %v1366, 0.0
      %v1368 = vsub.f32 %v1297, %v1363
      %v1369 = vsub.f32 %v1299, %v1363
      %v1370 = vsub.f32 %v1338, %v1363
      %v1371 = vadd.f32 %v1367, 1e-05
      %v1372 = vrsqrt.pop %v1371
      %v1373 = vmul.f32 %v1368, %v1372
      %v1374 = vmul.f32 %v1369, %v1372
      %v1375 = vmul.f32 %v1370, %v1372
      %1379 = vrot.lane.b32.xlu0 %v1373, 19
      %v1380 = vpop.permute.xlu0 %1379
      %1381 = vrot.lane.b32.xlu0 %v1374, 19
      %v1382 = vpop.permute.xlu0 %1381
      %1383 = vrot.lane.b32.xlu0 %v1375, 19
      %v1384 = vpop.permute.xlu0 %1383
      %vm1385 = vcmask 154624
      %v1386 = vsel %vm1385, %v1380, %v1382
      %v1387 = vsel %vm1385, %v1382, %v1384
      %v1392 = vadd.f32 %v174, %v1380
      %v1393 = vadd.f32 %v175, %v1386
      %v1394 = vadd.f32 %v176, %v1387
      %v1395 = vadd.f32 %v177, %v1384
      %v1400 = vcombine.low %v1392, %v1393
      %v1401 = vcombine.low %v1394, %v1395
      %1402 = vrot.lane.b32.xlu0 %v1400, 109
      %v1403 = vpop.permute.xlu0 %1402
      %1404 = vrot.lane.b32.xlu0 %v1401, 109
      %v1405 = vpop.permute.xlu0 %1404
      %v1406 = vrot.slane %v1403, 4
      %v1407 = vrot.slane %v1405, 4
      %v1408 = vsel %vm476, %v1406, %v1407
      %vm1409 = vcmask 891904
      %v1410 = vsel %vm1409, %v1403, %v1408
      %v1411 = vsel %vm1409, %v1405, %v1407
      %1414 = vst [vmem:[%s170] sm:$0xff] %v1410
      %1415 = vst [vmem:[%s170 + $0x8] sm:$0xf] %v1411
      %p1416 = scmp.lt.s32.totalorder %s14, 1
      %s1417 = scalar_select %p1416, %s14, 1
      %s1418 = smul.addr %s1417, 3
      %s1419 = smul.addr %s1418, 4
      %s1420 = scalar_lea.vmem %s3, %s1419
      // Predicated region
      $region33: #{resnet_block_forward.3} parent=31 // pred_check
        %p1421 = pneg %p100
      $region34: #{resnet_block_forward.3} parent=31 // pred_check_branch
        %1423 = sbr.rel (%p1421) target = $region36
      $region35: #{resnet_block_forward.3} parent=31 // pred_region
        _
      $region36: #{resnet_block_forward.3} parent=31 // pred_fallthru
        _
    $region32: #{resnet_block_forward.3} parent=5 // pred_fallthru
      _
    %p1424 = scmp.le.s32.totalorder 2, %s9
    // Predicated region
    $region37: #{resnet_block_forward.3} parent=5 // pred_check
      %p1425 = pneg %p1424
    $region38: #{resnet_block_forward.3} parent=5 // pred_check_branch
      %1427 = sbr.rel (%p1425) target = $region40
    $region39: #{resnet_block_forward.3} parent=5 // pred_region
      %s1428 = ssub.s32 %s9, 2
      // Predicated region
      $region41: #{resnet_block_forward.3} parent=39 // pred_check
        %p1429 = pneg %p106
      $region42: #{resnet_block_forward.3} parent=39 // pred_check_branch
        %1431 = sbr.rel (%p1429) target = $region44
      $region43: #{resnet_block_forward.3} parent=39 // pred_region
        %p1432 = scmp.lt.s32.totalorder %s15, 1
        %s1433 = scalar_select %p1432, %s15, 1
        %s1434 = smul.addr %s1433, 3
        %s1435 = smul.addr %s1434, 4
        %s1436 = scalar_lea.vmem %s3, %s1435
      $region44: #{resnet_block_forward.3} parent=39 // pred_fallthru
        _
    $region40: #{resnet_block_forward.3} parent=5 // pred_fallthru
      _
  $region6: #{resnet_block_forward.3} parent=0 // loop_footer
    %s13 = sadd.s32 1, %s9
  $region7: #{resnet_block_forward.3} parent=0 // loop_footer_branch
    %8 = sbr.rel target = $region3
  $region8: #{resnet_block_forward.3} parent=0 // loop_exit
    _

</llo_original>
